<compile_context>
chip_gen: v7x
topology: tpu7x:2x2x1
jax: 0.10.0
libtpu: 0.0.40
codegen_flags: <defaults>
</compile_context>

<pallas_src>
import functools

import jax
import jax.numpy as jnp
from jax.experimental import pallas as pl
from jax.experimental.pallas import tpu as pltpu

BN_EPS = 1e-5
LEAKY_SLOPE = 0.1
LANE = 128


def _round_up(x, m):
    return ((x + m - 1) // m) * m


# ---------------------------------------------------------------------------
# Pallas kernels
# ---------------------------------------------------------------------------
def _matmul_bias_act_kernel(x_ref, w_ref, b_ref, o_ref):
    # x: (tm, K) bf16, w: (K, tn) bf16, b: (1, tn) f32 -> o: (tm, tn) bf16
    acc = jnp.dot(x_ref[...], w_ref[...], preferred_element_type=jnp.float32)
    acc = acc + b_ref[...]
    o_ref[...] = jnp.where(acc >= 0, acc, LEAKY_SLOPE * acc).astype(o_ref.dtype)


def _conv3x3_s1_res_kernel(z_ref, w_ref, b_ref, r_ref, o_ref):
    # z: (1, (H+2)*W, 3*Cin_p) bf16   -- column taps unrolled into channels
    # w: (3, 3*Cin_p, tn) bf16        -- one matrix per row tap (di)
    # b: (1, tn) f32 ; r/o: (1, H*W, tn) bf16
    m = o_ref.shape[1]                       # H * W
    w_sp = (z_ref.shape[1] - m) // 2         # spatial width W
    acc = jnp.zeros((m, o_ref.shape[2]), jnp.float32)
    for di in range(3):                      # 3 row-shifted MXU accumulations
        lhs = z_ref[0, di * w_sp:di * w_sp + m, :]
        acc = acc + jnp.dot(lhs, w_ref[di],
                            preferred_element_type=jnp.float32)
    acc = acc + b_ref[...]
    act = jnp.where(acc >= 0, acc, LEAKY_SLOPE * acc)
    o_ref[0] = (r_ref[0].astype(jnp.float32) + act).astype(o_ref.dtype)


# ---------------------------------------------------------------------------
# Fused tiled matmul wrapper (1x1 convs + im2col'd stride-2 conv)
# ---------------------------------------------------------------------------
def fused_matmul_bias_act(x2d, w2d, bias_row):
    """(M, K) @ (K, Np) + bias -> LeakyReLU, bf16 out.  K, Np multiples of 128."""
    M, K = x2d.shape
    Kw, Np = w2d.shape
    assert K == Kw and K % LANE == 0 and Np % LANE == 0

    tn = LANE
    tm = min(512, _round_up(M, 8))
    Mp = _round_up(M, tm)

    x_p = jnp.pad(x2d, ((0, Mp - M), (0, 0))).astype(jnp.bfloat16)
    w_b = w2d.astype(jnp.bfloat16)
    b_b = bias_row.astype(jnp.float32)

    out = pl.pallas_call(
        _matmul_bias_act_kernel,
        out_shape=jax.ShapeDtypeStruct((Mp, Np), jnp.bfloat16),
        grid=(Mp // tm, Np // tn),
        in_specs=[
            pl.BlockSpec((tm, K), lambda i, j: (i, 0)),
            pl.BlockSpec((K, tn), lambda i, j: (0, j)),   # weight resident per j
            pl.BlockSpec((1, tn), lambda i, j: (0, j)),
        ],
        out_specs=pl.BlockSpec((tm, tn), lambda i, j: (i, j)),
        compiler_params=pltpu.CompilerParams(
            dimension_semantics=("parallel", "parallel")),
    )(x_p, w_b, b_b)
    return out[:M]


# ---------------------------------------------------------------------------
# ConvBnAct wrappers (BN folded into weights, channel padding to 128)
# ---------------------------------------------------------------------------
def conv_bn_act_1x1(x_nhwc, p, in_segments=None):
    """1x1 conv on a channel-padded NHWC activation."""
    N, H, W, Cp = x_nhwc.shape
    w = p["w"][:, :, 0, 0] * p["scale"][:, None]          # folded (Cout, Cin_real)
    cout = w.shape[0]
    cout_p = _round_up(cout, LANE)
    if in_segments is None:
        in_segments = [(w.shape[1], Cp)]                  # (real, padded) widths

    cols, off = [], 0
    for c_real, c_pad in in_segments:
        seg = w[:, off:off + c_real]
        seg = jnp.pad(seg, ((0, cout_p - cout), (0, c_pad - c_real)))
        cols.append(seg)
        off += c_real
    w2d = jnp.concatenate(cols, axis=1).T                 # (sum c_pad, cout_p)
    bias = jnp.pad(p["bias"], (0, cout_p - cout)).reshape(1, cout_p)

    y2d = fused_matmul_bias_act(x_nhwc.reshape(N * H * W, Cp), w2d, bias)
    return y2d.reshape(N, H, W, cout_p)


def _im2col_3x3(x_nhwc, stride):
    N, H, W, C = x_nhwc.shape
    xp = jnp.pad(x_nhwc, ((0, 0), (1, 1), (1, 1), (0, 0)))
    Ho = (H + 2 - 3) // stride + 1
    Wo = (W + 2 - 3) // stride + 1
    taps = []
    for di in range(3):
        for dj in range(3):
            taps.append(xp[:, di:di + (Ho - 1) * stride + 1:stride,
                           dj:dj + (Wo - 1) * stride + 1:stride, :])
    patches = jnp.concatenate(taps, axis=-1)              # (N, Ho, Wo, 9C)
    return patches.reshape(N * Ho * Wo, 9 * C), (N, Ho, Wo)


def conv_bn_act_3x3_s2(x_nhwc, p):
    """Stride-2 3x3 front conv on the raw (unpadded-channel) input via im2col."""
    w = p["w"] * p["scale"][:, None, None, None]
    cout, cin = w.shape[0], w.shape[1]
    cout_p = _round_up(cout, LANE)

    x2d, (N, Ho, Wo) = _im2col_3x3(x_nhwc, stride=2)
    K = 9 * cin
    Kp = _round_up(K, LANE)
    w2d = jnp.transpose(w, (2, 3, 1, 0)).reshape(K, cout)
    w2d = jnp.pad(w2d, ((0, Kp - K), (0, cout_p - cout)))
    x2d = jnp.pad(x2d, ((0, 0), (0, Kp - K)))
    bias = jnp.pad(p["bias"], (0, cout_p - cout)).reshape(1, cout_p)

    y2d = fused_matmul_bias_act(x2d, w2d, bias)
    return y2d.reshape(N, Ho, Wo, cout_p)


def conv_bn_act_3x3_s1_res(x_nhwc, p, residual):
    """Stride-1 3x3 conv + BN + LeakyReLU + residual, fused in one pallas_call."""
    N, H, W, Cp = x_nhwc.shape
    w = p["w"] * p["scale"][:, None, None, None]          # (Cout, Cin_real, 3, 3)
    cout, cin = w.shape[0], w.shape[1]
    cout_p = _round_up(cout, LANE)
    assert residual.shape[-1] == cout_p

    wt = jnp.transpose(w, (2, 3, 1, 0))                   # (kh, kw, cin, cout)
    wt = jnp.pad(wt, ((0, 0), (0, 0), (0, Cp - cin), (0, cout_p - cout)))
    wmat = wt.reshape(3, 3 * Cp, cout_p).astype(jnp.bfloat16)
    bias = jnp.pad(p["bias"], (0, cout_p - cout)).reshape(1, cout_p)
    bias = bias.astype(jnp.float32)

    # Unroll only the 3 column taps into channels (3x, not 9x), flatten spatial.
    xp = jnp.pad(x_nhwc, ((0, 0), (1, 1), (1, 1), (0, 0)))      # (N, H+2, W+2, Cp)
    z = jnp.concatenate([xp[:, :, 0:W, :], xp[:, :, 1:W + 1, :],
                         xp[:, :, 2:W + 2, :]], axis=-1)        # (N, H+2, W, 3Cp)
    z = z.reshape(N, (H + 2) * W, 3 * Cp).astype(jnp.bfloat16)
    res2 = residual.reshape(N, H * W, cout_p).astype(jnp.bfloat16)

    K3 = 3 * Cp
    tn = LANE
    out = pl.pallas_call(
        _conv3x3_s1_res_kernel,
        out_shape=jax.ShapeDtypeStruct((N, H * W, cout_p), jnp.bfloat16),
        grid=(N, cout_p // tn),
        in_specs=[
            pl.BlockSpec((1, (H + 2) * W, K3), lambda n, j: (n, 0, 0)),
            pl.BlockSpec((3, K3, tn), lambda n, j: (0, 0, j)),
            pl.BlockSpec((1, tn), lambda n, j: (0, j)),
            pl.BlockSpec((1, H * W, tn), lambda n, j: (n, 0, j)),
        ],
        out_specs=pl.BlockSpec((1, H * W, tn), lambda n, j: (n, 0, j)),
        compiler_params=pltpu.CompilerParams(
            dimension_semantics=("parallel", "parallel")),
    )(z, wmat, bias, res2)
    return out.reshape(N, H, W, cout_p)


# ---------------------------------------------------------------------------
# Parameters (deterministic, synthetic; BN folded to scale/bias, eval mode)
# ---------------------------------------------------------------------------
def make_conv_bn(key, cout, cin, k):
    kw, kg, kb = jax.random.split(key, 3)
    w = 0.1 * jax.random.normal(kw, (cout, cin, k, k), jnp.float32)
    gamma = 1.0 + 0.1 * jax.random.normal(kg, (cout,), jnp.float32)
    beta = 0.1 * jax.random.normal(kb, (cout,), jnp.float32)
    running_mean = jnp.zeros((cout,), jnp.float32)
    running_var = jnp.ones((cout,), jnp.float32)
    scale = gamma / jnp.sqrt(running_var + BN_EPS)
    bias = beta - running_mean * scale
    return {"w": w, "scale": scale, "bias": bias}


def make_params(key, inplanes, planes, num_blocks, reduction=True):
    p2 = planes // 2 if reduction else planes
    keys = jax.random.split(key, 5 + 2 * num_blocks)
    params = {
        "front": make_conv_bn(keys[0], planes, inplanes, 3),
        "left0": make_conv_bn(keys[1], p2, planes, 1),
        "left2": make_conv_bn(keys[2], p2, p2, 1),
        "right": make_conv_bn(keys[3], p2, planes, 1),
        "out": make_conv_bn(keys[4], planes,
                            planes if reduction else planes * 2, 1),
        "blocks": [],
    }
    for b in range(num_blocks):
        inp = p2
        squeezed = max(1, inp // 2) if not reduction else inp
        params["blocks"].append({
            "c1": make_conv_bn(keys[5 + 2 * b], squeezed, inp, 1),
            "c2": make_conv_bn(keys[6 + 2 * b], p2, squeezed, 3),
        })
    return params


# ---------------------------------------------------------------------------
# CSPDarkNetBlock forward (Pallas)
# ---------------------------------------------------------------------------
def csp_darknet_block_forward(x_nchw, params):
    x = jnp.transpose(x_nchw, (0, 2, 3, 1))                     # NCHW -> NHWC
    xf = conv_bn_act_3x3_s2(x, params["front"])                 # stride-2 front
    left = conv_bn_act_1x1(xf, params["left0"])
    for blk in params["blocks"]:
        t = conv_bn_act_1x1(left, blk["c1"])
        left = conv_bn_act_3x3_s1_res(t, blk["c2"], residual=left)   # x + conv(x)
    left = conv_bn_act_1x1(left, params["left2"])
    right = conv_bn_act_1x1(xf, params["right"])
    cat = jnp.concatenate([left, right], axis=-1)               # padded concat
    c_left = params["left2"]["w"].shape[0]
    c_right = params["right"]["w"].shape[0]
    out = conv_bn_act_1x1(cat, params["out"],
                          in_segments=[(c_left, left.shape[-1]),
                                       (c_right, right.shape[-1])])
    planes = params["out"]["w"].shape[0]
    out = out[..., :planes].astype(jnp.float32)                 # drop channel pad
    return jnp.transpose(out, (0, 3, 1, 2))                     # NHWC -> NCHW


# ---------------------------------------------------------------------------
# Pure-JAX reference (lax.conv, f32) for correctness check
# ---------------------------------------------------------------------------
def _ref_cba(x, p, k, stride, residual=None):
    pad = (k - 1) // 2
    y = jax.lax.conv_general_dilated(
        x, jnp.transpose(p["w"], (2, 3, 1, 0)),
        window_strides=(stride, stride),
        padding=[(pad, pad), (pad, pad)],
        dimension_numbers=("NHWC", "HWIO", "NHWC"),
        precision=jax.lax.Precision.HIGHEST)
    y = y * p["scale"] + p["bias"]
    y = jnp.where(y >= 0, y, LEAKY_SLOPE * y)
    return y if residual is None else residual + y


def csp_darknet_block_ref(x_nchw, params):
    x = jnp.transpose(x_nchw, (0, 2, 3, 1))
    x = _ref_cba(x, params["front"], 3, 2)
    left = _ref_cba(x, params["left0"], 1, 1)
    for blk in params["blocks"]:
        t = _ref_cba(left, blk["c1"], 1, 1)
        left = _ref_cba(t, blk["c2"], 3, 1, residual=left)
    left = _ref_cba(left, params["left2"], 1, 1)
    right = _ref_cba(x, params["right"], 1, 1)
    out = jnp.concatenate([left, right], axis=-1)
    out = _ref_cba(out, params["out"], 1, 1)
    return jnp.transpose(out, (0, 3, 1, 2))


# ---------------------------------------------------------------------------
if __name__ == "__main__":
    key = jax.random.PRNGKey(0)
    k_x, k_p = jax.random.split(key)

    inplanes, planes, num_blocks = 4, 8, 2
    x = jax.random.normal(k_x, (2, inplanes, 16, 16), jnp.float32)   # NCHW
    params = make_params(k_p, inplanes, planes, num_blocks, reduction=True)

    fwd = jax.jit(functools.partial(csp_darknet_block_forward, params=params))
    out = jax.block_until_ready(fwd(x))

    ref = jax.block_until_ready(csp_darknet_block_ref(x, params))
    assert out.shape == (2, planes, 8, 8), out.shape
    # bf16 operands with f32 accumulation -> bf16-level tolerance vs f32 ref.
    assert jnp.allclose(out, ref, rtol=2e-2, atol=5e-3), float(
        jnp.max(jnp.abs(out - ref)))

    print("KERNEL_OK")
</pallas_src>

<mosaic_0001>
module attributes {stable_mosaic.version = 11 : i64} {
  func.func @_matmul_bias_act_kernel(%arg0: i32, %arg1: i32, %arg2: memref<128x128xbf16, #tpu.memory_space<vmem>>, %arg3: memref<128x128xbf16, #tpu.memory_space<vmem>>, %arg4: memref<1x128xf32, #tpu.memory_space<vmem>>, %arg5: memref<128x128xbf16, #tpu.memory_space<vmem>>) attributes {dimension_semantics = [#tpu.dimension_semantics<parallel>, #tpu.dimension_semantics<parallel>], iteration_bounds = array<i64: 1, 1>, scalar_prefetch = 0 : i64, scratch_operands = 0 : i64, tpu.core_type = #tpu.core_type<tc>, window_params = [{transform_indices = @transform_0, window_bounds = array<i64: 128, 128>}, {transform_indices = @transform_1, window_bounds = array<i64: 128, 128>}, {transform_indices = @transform_2, window_bounds = array<i64: 1, 128>}, {transform_indices = @transform_3, window_bounds = array<i64: 128, 128>}]} {
    %c0 = arith.constant 0 : index
    %c0_0 = arith.constant 0 : index
    %0 = vector.load %arg2[%c0, %c0_0] : memref<128x128xbf16, #tpu.memory_space<vmem>>, vector<128x128xbf16>
    %c0_1 = arith.constant 0 : index
    %c0_2 = arith.constant 0 : index
    %1 = vector.load %arg3[%c0_1, %c0_2] : memref<128x128xbf16, #tpu.memory_space<vmem>>, vector<128x128xbf16>
    %cst = arith.constant dense<0.000000e+00> : vector<128x128xf32>
    %2 = tpu.matmul %0, %1, %cst {dimension_numbers = #tpu.dot_dimension_numbers<[1], [0], [0], [1], [0, 0, 1, 1], [], []>} : vector<128x128xbf16>, vector<128x128xbf16>, vector<128x128xf32> -> vector<128x128xf32>
    %c0_3 = arith.constant 0 : index
    %c0_4 = arith.constant 0 : index
    %3 = vector.load %arg4[%c0_3, %c0_4] : memref<1x128xf32, #tpu.memory_space<vmem>>, vector<1x128xf32>
    %4 = vector.broadcast %3 : vector<1x128xf32> to vector<128x128xf32>
    %5 = arith.addf %2, %4 : vector<128x128xf32>
    %cst_5 = arith.constant 0.000000e+00 : f32
    %6 = vector.broadcast %cst_5 : f32 to vector<128x128xf32>
    %7 = arith.cmpf oge, %5, %6 : vector<128x128xf32>
    %cst_6 = arith.constant 1.000000e-01 : f32
    %8 = vector.broadcast %cst_6 : f32 to vector<128x128xf32>
    %9 = arith.mulf %8, %5 : vector<128x128xf32>
    %10 = arith.select %7, %5, %9 : vector<128x128xi1>, vector<128x128xf32>
    %11 = arith.truncf %10 : vector<128x128xf32> to vector<128x128xbf16>
    %c0_7 = arith.constant 0 : index
    %c0_8 = arith.constant 0 : index
    %12 = vector.load %arg5[%c0_7, %c0_8] : memref<128x128xbf16, #tpu.memory_space<vmem>>, vector<128x128xbf16>
    tpu.vector_store %arg5[%c0_7, %c0_8], %11 {strides = array<i32>} : memref<128x128xbf16, #tpu.memory_space<vmem>>, vector<128x128xbf16>,
    return
  }
  func.func @transform_0(%arg0: i32, %arg1: i32) -> (i32, i32) {
    %c0_i32 = arith.constant 0 : i32
    %c0_i32_0 = arith.constant 0 : i32
    return %arg0, %c0_i32 : i32, i32
  }
  func.func @transform_1(%arg0: i32, %arg1: i32) -> (i32, i32) {
    %c0_i32 = arith.constant 0 : i32
    %c0_i32_0 = arith.constant 0 : i32
    return %c0_i32, %arg1 : i32, i32
  }
  func.func @transform_2(%arg0: i32, %arg1: i32) -> (i32, i32) {
    %c0_i32 = arith.constant 0 : i32
    %c0_i32_0 = arith.constant 0 : i32
    return %c0_i32, %arg1 : i32, i32
  }
  func.func @transform_3(%arg0: i32, %arg1: i32) -> (i32, i32) {
    %c0_i32 = arith.constant 0 : i32
    return %arg0, %arg1 : i32, i32
  }
}

module attributes {stable_mosaic.version = 11 : i64} {
  func.func @_conv3x3_s1_res_kernel(%arg0: i32, %arg1: i32, %arg2: memref<1x80x384xbf16, #tpu.memory_space<vmem>>, %arg3: memref<3x384x128xbf16, #tpu.memory_space<vmem>>, %arg4: memref<1x128xf32, #tpu.memory_space<vmem>>, %arg5: memref<1x64x128xbf16, #tpu.memory_space<vmem>>, %arg6: memref<1x64x128xbf16, #tpu.memory_space<vmem>>) attributes {dimension_semantics = [#tpu.dimension_semantics<parallel>, #tpu.dimension_semantics<parallel>], iteration_bounds = array<i64: 2, 1>, scalar_prefetch = 0 : i64, scratch_operands = 0 : i64, tpu.core_type = #tpu.core_type<tc>, window_params = [{transform_indices = @transform_0, window_bounds = array<i64: 1, 80, 384>}, {transform_indices = @transform_1, window_bounds = array<i64: 3, 384, 128>}, {transform_indices = @transform_2, window_bounds = array<i64: 1, 128>}, {transform_indices = @transform_3, window_bounds = array<i64: 1, 64, 128>}, {transform_indices = @transform_4, window_bounds = array<i64: 1, 64, 128>}]} {
    %cst = arith.constant 0.000000e+00 : f32
    %0 = vector.broadcast %cst : f32 to vector<64x128xf32>
    %c0 = arith.constant 0 : index
    %c0_0 = arith.constant 0 : index
    %c0_1 = arith.constant 0 : index
    %1 = vector.load %arg2[%c0, %c0_0, %c0_1] : memref<1x80x384xbf16, #tpu.memory_space<vmem>>, vector<1x64x384xbf16>
    %2 = vector.shape_cast %1 : vector<1x64x384xbf16> to vector<64x384xbf16>
    %c0_2 = arith.constant 0 : index
    %c0_3 = arith.constant 0 : index
    %c0_4 = arith.constant 0 : index
    %3 = vector.load %arg3[%c0_2, %c0_3, %c0_4] : memref<3x384x128xbf16, #tpu.memory_space<vmem>>, vector<1x384x128xbf16>
    %4 = vector.shape_cast %3 : vector<1x384x128xbf16> to vector<384x128xbf16>
    %cst_5 = arith.constant dense<0.000000e+00> : vector<64x128xf32>
    %5 = tpu.matmul %2, %4, %cst_5 {dimension_numbers = #tpu.dot_dimension_numbers<[1], [0], [0], [1], [0, 0, 1, 1], [], []>} : vector<64x384xbf16>, vector<384x128xbf16>, vector<64x128xf32> -> vector<64x128xf32>
    %6 = arith.addf %0, %5 : vector<64x128xf32>
    %c0_6 = arith.constant 0 : index
    %c8 = arith.constant 8 : index
    %c0_7 = arith.constant 0 : index
    %7 = vector.load %arg2[%c0_6, %c8, %c0_7] : memref<1x80x384xbf16, #tpu.memory_space<vmem>>, vector<1x64x384xbf16>
    %8 = vector.shape_cast %7 : vector<1x64x384xbf16> to vector<64x384xbf16>
    %c1 = arith.constant 1 : index
    %c0_8 = arith.constant 0 : index
    %c0_9 = arith.constant 0 : index
    %9 = vector.load %arg3[%c1, %c0_8, %c0_9] : memref<3x384x128xbf16, #tpu.memory_space<vmem>>, vector<1x384x128xbf16>
    %10 = vector.shape_cast %9 : vector<1x384x128xbf16> to vector<384x128xbf16>
    %cst_10 = arith.constant dense<0.000000e+00> : vector<64x128xf32>
    %11 = tpu.matmul %8, %10, %cst_10 {dimension_numbers = #tpu.dot_dimension_numbers<[1], [0], [0], [1], [0, 0, 1, 1], [], []>} : vector<64x384xbf16>, vector<384x128xbf16>, vector<64x128xf32> -> vector<64x128xf32>
    %12 = arith.addf %6, %11 : vector<64x128xf32>
    %c0_11 = arith.constant 0 : index
    %c16 = arith.constant 16 : index
    %c0_12 = arith.constant 0 : index
    %13 = vector.load %arg2[%c0_11, %c16, %c0_12] : memref<1x80x384xbf16, #tpu.memory_space<vmem>>, vector<1x64x384xbf16>
    %14 = vector.shape_cast %13 : vector<1x64x384xbf16> to vector<64x384xbf16>
    %c2 = arith.constant 2 : index
    %c0_13 = arith.constant 0 : index
    %c0_14 = arith.constant 0 : index
    %15 = vector.load %arg3[%c2, %c0_13, %c0_14] : memref<3x384x128xbf16, #tpu.memory_space<vmem>>, vector<1x384x128xbf16>
    %16 = vector.shape_cast %15 : vector<1x384x128xbf16> to vector<384x128xbf16>
    %cst_15 = arith.constant dense<0.000000e+00> : vector<64x128xf32>
    %17 = tpu.matmul %14, %16, %cst_15 {dimension_numbers = #tpu.dot_dimension_numbers<[1], [0], [0], [1], [0, 0, 1, 1], [], []>} : vector<64x384xbf16>, vector<384x128xbf16>, vector<64x128xf32> -> vector<64x128xf32>
    %18 = arith.addf %12, %17 : vector<64x128xf32>
    %c0_16 = arith.constant 0 : index
    %c0_17 = arith.constant 0 : index
    %19 = vector.load %arg4[%c0_16, %c0_17] : memref<1x128xf32, #tpu.memory_space<vmem>>, vector<1x128xf32>
    %20 = vector.broadcast %19 : vector<1x128xf32> to vector<64x128xf32>
    %21 = arith.addf %18, %20 : vector<64x128xf32>
    %cst_18 = arith.constant 0.000000e+00 : f32
    %22 = vector.broadcast %cst_18 : f32 to vector<64x128xf32>
    %23 = arith.cmpf oge, %21, %22 : vector<64x128xf32>
    %cst_19 = arith.constant 1.000000e-01 : f32
    %24 = vector.broadcast %cst_19 : f32 to vector<64x128xf32>
    %25 = arith.mulf %24, %21 : vector<64x128xf32>
    %26 = arith.select %23, %21, %25 : vector<64x128xi1>, vector<64x128xf32>
    %c0_20 = arith.constant 0 : index
    %c0_21 = arith.constant 0 : index
    %c0_22 = arith.constant 0 : index
    %27 = vector.load %arg5[%c0_20, %c0_21, %c0_22] : memref<1x64x128xbf16, #tpu.memory_space<vmem>>, vector<1x64x128xbf16>
    %28 = vector.shape_cast %27 : vector<1x64x128xbf16> to vector<64x128xbf16>
    %29 = arith.extf %28 : vector<64x128xbf16> to vector<64x128xf32>
    %30 = arith.addf %29, %26 : vector<64x128xf32>
    %31 = arith.truncf %30 : vector<64x128xf32> to vector<64x128xbf16>
    %c0_23 = arith.constant 0 : index
    %c0_24 = arith.constant 0 : index
    %c0_25 = arith.constant 0 : index
    %32 = vector.load %arg6[%c0_23, %c0_24, %c0_25] : memref<1x64x128xbf16, #tpu.memory_space<vmem>>, vector<1x64x128xbf16>
    %33 = vector.shape_cast %32 : vector<1x64x128xbf16> to vector<64x128xbf16>
    %34 = vector.shape_cast %31 : vector<64x128xbf16> to vector<1x64x128xbf16>
    tpu.vector_store %arg6[%c0_23, %c0_24, %c0_25], %34 {strides = array<i32>} : memref<1x64x128xbf16, #tpu.memory_space<vmem>>, vector<1x64x128xbf16>,
    return
  }
  func.func @transform_0(%arg0: i32, %arg1: i32) -> (i32, i32, i32) {
    %c0_i32 = arith.constant 0 : i32
    %c0_i32_0 = arith.constant 0 : i32
    %c0_i32_1 = arith.constant 0 : i32
    return %arg0, %c0_i32, %c0_i32_0 : i32, i32, i32
  }
  func.func @transform_1(%arg0: i32, %arg1: i32) -> (i32, i32, i32) {
    %c0_i32 = arith.constant 0 : i32
    %c0_i32_0 = arith.constant 0 : i32
    %c0_i32_1 = arith.constant 0 : i32
    return %c0_i32, %c0_i32_0, %arg1 : i32, i32, i32
  }
  func.func @transform_2(%arg0: i32, %arg1: i32) -> (i32, i32) {
    %c0_i32 = arith.constant 0 : i32
    %c0_i32_0 = arith.constant 0 : i32
    return %c0_i32, %arg1 : i32, i32
  }
  func.func @transform_3(%arg0: i32, %arg1: i32) -> (i32, i32, i32) {
    %c0_i32 = arith.constant 0 : i32
    %c0_i32_0 = arith.constant 0 : i32
    return %arg0, %c0_i32, %arg1 : i32, i32, i32
  }
  func.func @transform_4(%arg0: i32, %arg1: i32) -> (i32, i32, i32) {
    %c0_i32 = arith.constant 0 : i32
    %c0_i32_0 = arith.constant 0 : i32
    return %arg0, %c0_i32, %arg1 : i32, i32, i32
  }
}

module attributes {stable_mosaic.version = 11 : i64} {
  func.func @_matmul_bias_act_kernel(%arg0: i32, %arg1: i32, %arg2: memref<128x256xbf16, #tpu.memory_space<vmem>>, %arg3: memref<256x128xbf16, #tpu.memory_space<vmem>>, %arg4: memref<1x128xf32, #tpu.memory_space<vmem>>, %arg5: memref<128x128xbf16, #tpu.memory_space<vmem>>) attributes {dimension_semantics = [#tpu.dimension_semantics<parallel>, #tpu.dimension_semantics<parallel>], iteration_bounds = array<i64: 1, 1>, scalar_prefetch = 0 : i64, scratch_operands = 0 : i64, tpu.core_type = #tpu.core_type<tc>, window_params = [{transform_indices = @transform_0, window_bounds = array<i64: 128, 256>}, {transform_indices = @transform_1, window_bounds = array<i64: 256, 128>}, {transform_indices = @transform_2, window_bounds = array<i64: 1, 128>}, {transform_indices = @transform_3, window_bounds = array<i64: 128, 128>}]} {
    %c0 = arith.constant 0 : index
    %c0_0 = arith.constant 0 : index
    %0 = vector.load %arg2[%c0, %c0_0] : memref<128x256xbf16, #tpu.memory_space<vmem>>, vector<128x256xbf16>
    %c0_1 = arith.constant 0 : index
    %c0_2 = arith.constant 0 : index
    %1 = vector.load %arg3[%c0_1, %c0_2] : memref<256x128xbf16, #tpu.memory_space<vmem>>, vector<256x128xbf16>
    %cst = arith.constant dense<0.000000e+00> : vector<128x128xf32>
    %2 = tpu.matmul %0, %1, %cst {dimension_numbers = #tpu.dot_dimension_numbers<[1], [0], [0], [1], [0, 0, 1, 1], [], []>} : vector<128x256xbf16>, vector<256x128xbf16>, vector<128x128xf32> -> vector<128x128xf32>
    %c0_3 = arith.constant 0 : index
    %c0_4 = arith.constant 0 : index
    %3 = vector.load %arg4[%c0_3, %c0_4] : memref<1x128xf32, #tpu.memory_space<vmem>>, vector<1x128xf32>
    %4 = vector.broadcast %3 : vector<1x128xf32> to vector<128x128xf32>
    %5 = arith.addf %2, %4 : vector<128x128xf32>
    %cst_5 = arith.constant 0.000000e+00 : f32
    %6 = vector.broadcast %cst_5 : f32 to vector<128x128xf32>
    %7 = arith.cmpf oge, %5, %6 : vector<128x128xf32>
    %cst_6 = arith.constant 1.000000e-01 : f32
    %8 = vector.broadcast %cst_6 : f32 to vector<128x128xf32>
    %9 = arith.mulf %8, %5 : vector<128x128xf32>
    %10 = arith.select %7, %5, %9 : vector<128x128xi1>, vector<128x128xf32>
    %11 = arith.truncf %10 : vector<128x128xf32> to vector<128x128xbf16>
    %c0_7 = arith.constant 0 : index
    %c0_8 = arith.constant 0 : index
    %12 = vector.load %arg5[%c0_7, %c0_8] : memref<128x128xbf16, #tpu.memory_space<vmem>>, vector<128x128xbf16>
    tpu.vector_store %arg5[%c0_7, %c0_8], %11 {strides = array<i32>} : memref<128x128xbf16, #tpu.memory_space<vmem>>, vector<128x128xbf16>,
    return
  }
  func.func @transform_0(%arg0: i32, %arg1: i32) -> (i32, i32) {
    %c0_i32 = arith.constant 0 : i32
    %c0_i32_0 = arith.constant 0 : i32
    return %arg0, %c0_i32 : i32, i32
  }
  func.func @transform_1(%arg0: i32, %arg1: i32) -> (i32, i32) {
    %c0_i32 = arith.constant 0 : i32
    %c0_i32_0 = arith.constant 0 : i32
    return %c0_i32, %arg1 : i32, i32
  }
  func.func @transform_2(%arg0: i32, %arg1: i32) -> (i32, i32) {
    %c0_i32 = arith.constant 0 : i32
    %c0_i32_0 = arith.constant 0 : i32
    return %c0_i32, %arg1 : i32, i32
  }
  func.func @transform_3(%arg0: i32, %arg1: i32) -> (i32, i32) {
    %c0_i32 = arith.constant 0 : i32
    return %arg0, %arg1 : i32, i32
  }
}

</mosaic_0001>

<llo_original>
// kernel: csp_darknet_block_forward.9
$region0: #{csp_darknet_block_forward.9}
  #allocation0 [shape = 'u32[]', space=smem, size = 0x4, offset = 0x4, fixed_abs, tag = 'smem constant byte address 0x4 - core index']
  #allocation1 [shape = 'u32[144,128]{1,0:T(1,128)}', space=vmem, size = 0x12000, scoped, tag = 'internal scratch']
  %s0 = inlined_call_operand.vmem [shape: bf16[128,128], index: 0, kind: input, shape index: {}]
  %s1 = inlined_call_operand.vmem [shape: bf16[128,128], index: 1, kind: input, shape index: {}]
  %s2 = inlined_call_operand.vmem [shape: f32[1,128], index: 2, kind: input, shape index: {}]
  %s3 = inlined_call_operand.vmem [shape: bf16[128,128], index: 3, kind: output, shape index: {}]
  %s4 = sld [smem:[#allocation0]]
  $region22: #{csp_darknet_block_forward.9} parent=0
    _
  %s6 = ssub.s32 1, %s4
  %s7 = scalar_select 0, %s6, %s4
  // Predicated region
  $region2: #{csp_darknet_block_forward.9} parent=0 // pred_check
    _
  $region3: #{csp_darknet_block_forward.9} parent=0 // pred_check_branch
    %9 = sbr.rel (0) target = $region5
  $region4: #{csp_darknet_block_forward.9} parent=0 // pred_region
    _
  $region5: #{csp_darknet_block_forward.9} parent=0 // pred_fallthru
    _
  // Predicated region
  $region6: #{csp_darknet_block_forward.9} parent=0 // pred_check
    _
  $region7: #{csp_darknet_block_forward.9} parent=0 // pred_check_branch
    %11 = sbr.rel (0) target = $region9
  $region8: #{csp_darknet_block_forward.9} parent=0 // pred_region
    _
  $region9: #{csp_darknet_block_forward.9} parent=0 // pred_fallthru
    _
  // Predicated region
  $region10: #{csp_darknet_block_forward.9} parent=0 // pred_check
    _
  $region11: #{csp_darknet_block_forward.9} parent=0 // pred_check_branch
    %13 = sbr.rel (0) target = $region13
  $region12: #{csp_darknet_block_forward.9} parent=0 // pred_region
    _
  $region13: #{csp_darknet_block_forward.9} parent=0 // pred_fallthru
    _
  %v15 = vld [vmem:[%s0] sm:$0xf]
  %v16 = vld [vmem:[%s0 + $0x4] sm:$0xf]
  %v17 = vld [vmem:[%s0 + $0x8] sm:$0xf]
  %v18 = vld [vmem:[%s0 + $0xc] sm:$0xf]
  %v19 = vld [vmem:[%s0 + $0x10] sm:$0xf]
  %v20 = vld [vmem:[%s0 + $0x14] sm:$0xf]
  %v21 = vld [vmem:[%s0 + $0x18] sm:$0xf]
  %v22 = vld [vmem:[%s0 + $0x1c] sm:$0xf]
  %v23 = vld [vmem:[%s0 + $0x20] sm:$0xf]
  %v24 = vld [vmem:[%s0 + $0x24] sm:$0xf]
  %v25 = vld [vmem:[%s0 + $0x28] sm:$0xf]
  %v26 = vld [vmem:[%s0 + $0x2c] sm:$0xf]
  %v27 = vld [vmem:[%s0 + $0x30] sm:$0xf]
  %v28 = vld [vmem:[%s0 + $0x34] sm:$0xf]
  %v29 = vld [vmem:[%s0 + $0x38] sm:$0xf]
  %v30 = vld [vmem:[%s0 + $0x3c] sm:$0xf]
  %v31 = vld [vmem:[%s1] sm:$0xf]
  %v32 = vld [vmem:[%s1 + $0x4] sm:$0xf]
  %v33 = vld [vmem:[%s1 + $0x8] sm:$0xf]
  %v34 = vld [vmem:[%s1 + $0xc] sm:$0xf]
  %v35 = vld [vmem:[%s1 + $0x10] sm:$0xf]
  %v36 = vld [vmem:[%s1 + $0x14] sm:$0xf]
  %v37 = vld [vmem:[%s1 + $0x18] sm:$0xf]
  %v38 = vld [vmem:[%s1 + $0x1c] sm:$0xf]
  %v39 = vld [vmem:[%s1 + $0x20] sm:$0xf]
  %v40 = vld [vmem:[%s1 + $0x24] sm:$0xf]
  %v41 = vld [vmem:[%s1 + $0x28] sm:$0xf]
  %v42 = vld [vmem:[%s1 + $0x2c] sm:$0xf]
  %v43 = vld [vmem:[%s1 + $0x30] sm:$0xf]
  %v44 = vld [vmem:[%s1 + $0x34] sm:$0xf]
  %v45 = vld [vmem:[%s1 + $0x38] sm:$0xf]
  %v46 = vld [vmem:[%s1 + $0x3c] sm:$0xf]
  %v47 = vld [vmem:[%s2] sm:$0x1]
  %v49 = vlaneseq
  %v50 = vshrl.u32 %v49, 7
  %v51 = vsub.s32 0, %v50
  %v52 = vrot.slane %v47, %v51
  %v70 = vunpack.c.l.b16 %v15
  %v71 = vunpack.c.l.b16 %v16
  %v72 = vunpack.c.l.b16 %v17
  %v73 = vunpack.c.l.b16 %v18
  %v74 = vunpack.c.l.b16 %v19
  %v75 = vunpack.c.l.b16 %v20
  %v76 = vunpack.c.l.b16 %v21
  %v77 = vunpack.c.l.b16 %v22
  %v78 = vunpack.c.l.b16 %v23
  %v79 = vunpack.c.l.b16 %v24
  %v80 = vunpack.c.l.b16 %v25
  %v81 = vunpack.c.l.b16 %v26
  %v82 = vunpack.c.l.b16 %v27
  %v83 = vunpack.c.l.b16 %v28
  %v84 = vunpack.c.l.b16 %v29
  %v85 = vunpack.c.l.b16 %v30
  %v86 = vpack.c.b16 %v71, %v70
  %v87 = vpack.c.b16 %v73, %v72
  %v88 = vpack.c.b16 %v75, %v74
  %v89 = vpack.c.b16 %v77, %v76
  %v90 = vpack.c.b16 %v79, %v78
  %v91 = vpack.c.b16 %v81, %v80
  %v92 = vpack.c.b16 %v83, %v82
  %v93 = vpack.c.b16 %v85, %v84
  %v118 = vunpack.c.l.b16 %v31
  %v119 = vunpack.c.l.b16 %v32
  %v120 = vunpack.c.l.b16 %v33
  %v121 = vunpack.c.l.b16 %v34
  %v122 = vunpack.c.l.b16 %v35
  %v123 = vunpack.c.l.b16 %v36
  %v124 = vunpack.c.l.b16 %v37
  %v125 = vunpack.c.l.b16 %v38
  %v126 = vunpack.c.l.b16 %v39
  %v127 = vunpack.c.l.b16 %v40
  %v128 = vunpack.c.l.b16 %v41
  %v129 = vunpack.c.l.b16 %v42
  %v130 = vunpack.c.l.b16 %v43
  %v131 = vunpack.c.l.b16 %v44
  %v132 = vunpack.c.l.b16 %v45
  %v133 = vunpack.c.l.b16 %v46
  %v134 = vpack.c.b16 %v119, %v118
  %v135 = vpack.c.b16 %v121, %v120
  %v136 = vpack.c.b16 %v123, %v122
  %v137 = vpack.c.b16 %v125, %v124
  %v138 = vpack.c.b16 %v127, %v126
  %v139 = vpack.c.b16 %v129, %v128
  %v140 = vpack.c.b16 %v131, %v130
  %v141 = vpack.c.b16 %v133, %v132
  %150 = vmatprep.subr.bf16.mxu0 0
  %151 = vmatpush1.bf16.msra.mxu0 %v134
  %152 = vmatprep.subr.bf16.mxu0 0
  %153 = vmatpush1.bf16.msra.mxu0 %v135
  %154 = vmatprep.subr.bf16.mxu0 0
  %155 = vmatpush1.bf16.msra.mxu0 %v136
  %156 = vmatprep.subr.bf16.mxu0 0
  %157 = vmatpush1.bf16.msra.mxu0 %v137
  %158 = vmatprep.subr.bf16.mxu0 0
  %159 = vmatpush1.bf16.msra.mxu0 %v138
  %160 = vmatprep.subr.bf16.mxu0 0
  %161 = vmatpush1.bf16.msra.mxu0 %v139
  %162 = vmatprep.subr.bf16.mxu0 0
  %163 = vmatpush1.bf16.msra.mxu0 %v140
  %164 = vmatprep.subr.bf16.mxu0 0
  %165 = vmatpush1.bf16.msra.mxu0 %v141
  %166 = vmatprep.subr.bf16.mxu0 0
  %167 = vmatpush1.bf16.msra.mxu0 0
  %168 = vmatprep.subr.bf16.mxu0 0
  %169 = vmatpush1.bf16.msra.mxu0 0
  %170 = vmatprep.subr.bf16.mxu0 0
  %171 = vmatpush1.bf16.msra.mxu0 0
  %172 = vmatprep.subr.bf16.mxu0 0
  %173 = vmatpush1.bf16.msra.mxu0 0
  %174 = vmatprep.subr.bf16.mxu0 0
  %175 = vmatpush1.bf16.msra.mxu0 0
  %176 = vmatprep.subr.bf16.mxu0 0
  %177 = vmatpush1.bf16.msra.mxu0 0
  %178 = vmatprep.subr.bf16.mxu0 0
  %179 = vmatpush1.bf16.msra.mxu0 0
  %180 = vmatprep.subr.bf16.mxu0 0
  %181 = vmatpush1.bf16.msra.mxu0 0
  %182 = vmatprep.mubr.bf16.mxu0 0
  %183 = vmatmul.mubr.bf16.gmra.mrb[0].mxu0 %v86
  %v184 = vpop.f32.mrb[0].mxu0
  %v185 = vadd.f32 %v52, %v184
  %v186 = vpop.f32.mrb[0].mxu0
  %v187 = vpop.f32.mrb[0].mxu0
  %v188 = vadd.f32 %v52, %v187
  %v189 = vpop.f32.mrb[0].mxu0
  %190 = vmatprep.mubr.bf16.mxu0 0
  %191 = vmatmul.mubr.bf16.gmra.mrb[0].mxu0 %v87
  %v192 = vpop.f32.mrb[0].mxu0
  %v193 = vadd.f32 %v52, %v192
  %v194 = vpop.f32.mrb[0].mxu0
  %v195 = vpop.f32.mrb[0].mxu0
  %v196 = vadd.f32 %v52, %v195
  %v197 = vpop.f32.mrb[0].mxu0
  %198 = vmatprep.mubr.bf16.mxu0 0
  %199 = vmatmul.mubr.bf16.gmra.mrb[0].mxu0 %v88
  %v200 = vpop.f32.mrb[0].mxu0
  %v201 = vadd.f32 %v52, %v200
  %v202 = vpop.f32.mrb[0].mxu0
  %v203 = vpop.f32.mrb[0].mxu0
  %v204 = vadd.f32 %v52, %v203
  %v205 = vpop.f32.mrb[0].mxu0
  %206 = vmatprep.mubr.bf16.mxu0 0
  %207 = vmatmul.mubr.bf16.gmra.mrb[0].mxu0 %v89
  %v208 = vpop.f32.mrb[0].mxu0
  %v209 = vadd.f32 %v52, %v208
  %v210 = vpop.f32.mrb[0].mxu0
  %v211 = vpop.f32.mrb[0].mxu0
  %v212 = vadd.f32 %v52, %v211
  %v213 = vpop.f32.mrb[0].mxu0
  %214 = vmatprep.mubr.bf16.mxu0 0
  %215 = vmatmul.mubr.bf16.gmra.mrb[0].mxu0 %v90
  %v216 = vpop.f32.mrb[0].mxu0
  %v217 = vadd.f32 %v52, %v216
  %v218 = vpop.f32.mrb[0].mxu0
  %v219 = vpop.f32.mrb[0].mxu0
  %v220 = vadd.f32 %v52, %v219
  %v221 = vpop.f32.mrb[0].mxu0
  %222 = vmatprep.mubr.bf16.mxu0 0
  %223 = vmatmul.mubr.bf16.gmra.mrb[0].mxu0 %v91
  %v224 = vpop.f32.mrb[0].mxu0
  %v225 = vadd.f32 %v52, %v224
  %v226 = vpop.f32.mrb[0].mxu0
  %v227 = vpop.f32.mrb[0].mxu0
  %v228 = vadd.f32 %v52, %v227
  %v229 = vpop.f32.mrb[0].mxu0
  %230 = vmatprep.mubr.bf16.mxu0 0
  %231 = vmatmul.mubr.bf16.gmra.mrb[0].mxu0 %v92
  %v232 = vpop.f32.mrb[0].mxu0
  %v233 = vadd.f32 %v52, %v232
  %v234 = vpop.f32.mrb[0].mxu0
  %v235 = vpop.f32.mrb[0].mxu0
  %v236 = vadd.f32 %v52, %v235
  %v237 = vpop.f32.mrb[0].mxu0
  %238 = vmatprep.mubr.bf16.mxu0 0
  %239 = vmatmul.mubr.bf16.gmra.mrb[0].mxu0 %v93
  %v240 = vpop.f32.mrb[0].mxu0
  %v241 = vadd.f32 %v52, %v240
  %v242 = vpop.f32.mrb[0].mxu0
  %v243 = vpop.f32.mrb[0].mxu0
  %v244 = vadd.f32 %v52, %v243
  %v245 = vpop.f32.mrb[0].mxu0
  %246 = vdwg.mxu0
  %vm247 = vcmp.ge.f32.partialorder %v185, 0.0
  %vm248 = vcmp.ge.f32.partialorder %v188, 0.0
  %vm249 = vcmp.ge.f32.partialorder %v193, 0.0
  %vm250 = vcmp.ge.f32.partialorder %v196, 0.0
  %vm251 = vcmp.ge.f32.partialorder %v201, 0.0
  %vm252 = vcmp.ge.f32.partialorder %v204, 0.0
  %vm253 = vcmp.ge.f32.partialorder %v209, 0.0
  %vm254 = vcmp.ge.f32.partialorder %v212, 0.0
  %vm255 = vcmp.ge.f32.partialorder %v217, 0.0
  %vm256 = vcmp.ge.f32.partialorder %v220, 0.0
  %vm257 = vcmp.ge.f32.partialorder %v225, 0.0
  %vm258 = vcmp.ge.f32.partialorder %v228, 0.0
  %vm259 = vcmp.ge.f32.partialorder %v233, 0.0
  %vm260 = vcmp.ge.f32.partialorder %v236, 0.0
  %vm261 = vcmp.ge.f32.partialorder %v241, 0.0
  %vm262 = vcmp.ge.f32.partialorder %v244, 0.0
  %v263 = vmul.f32 %v185, 0.1
  %v264 = vmul.f32 %v188, 0.1
  %v265 = vmul.f32 %v193, 0.1
  %v266 = vmul.f32 %v196, 0.1
  %v267 = vmul.f32 %v201, 0.1
  %v268 = vmul.f32 %v204, 0.1
  %v269 = vmul.f32 %v209, 0.1
  %v270 = vmul.f32 %v212, 0.1
  %v271 = vmul.f32 %v217, 0.1
  %v272 = vmul.f32 %v220, 0.1
  %v273 = vmul.f32 %v225, 0.1
  %v274 = vmul.f32 %v228, 0.1
  %v275 = vmul.f32 %v233, 0.1
  %v276 = vmul.f32 %v236, 0.1
  %v277 = vmul.f32 %v241, 0.1
  %v278 = vmul.f32 %v244, 0.1
  %v279 = vsel %vm247, %v185, %v263
  %v280 = vsel %vm248, %v188, %v264
  %v281 = vsel %vm249, %v193, %v265
  %v282 = vsel %vm250, %v196, %v266
  %v283 = vsel %vm251, %v201, %v267
  %v284 = vsel %vm252, %v204, %v268
  %v285 = vsel %vm253, %v209, %v269
  %v286 = vsel %vm254, %v212, %v270
  %v287 = vsel %vm255, %v217, %v271
  %v288 = vsel %vm256, %v220, %v272
  %v289 = vsel %vm257, %v225, %v273
  %v290 = vsel %vm258, %v228, %v274
  %v291 = vsel %vm259, %v233, %v275
  %v292 = vsel %vm260, %v236, %v276
  %v293 = vsel %vm261, %v241, %v277
  %v294 = vsel %vm262, %v244, %v278
  %v295 = vpack.c.bf16 %v280, %v279
  %v296 = vpack.c.bf16 %v282, %v281
  %v297 = vpack.c.bf16 %v284, %v283
  %v298 = vpack.c.bf16 %v286, %v285
  %v299 = vpack.c.bf16 %v288, %v287
  %v300 = vpack.c.bf16 %v290, %v289
  %v301 = vpack.c.bf16 %v292, %v291
  %v302 = vpack.c.bf16 %v294, %v293
  %v311 = vunpack.c.l.b16 %v295
  %v312 = vunpack.c.h.b16 %v295
  %v313 = vunpack.c.l.b16 %v296
  %v314 = vunpack.c.h.b16 %v296
  %v315 = vunpack.c.l.b16 %v297
  %v316 = vunpack.c.h.b16 %v297
  %v317 = vunpack.c.l.b16 %v298
  %v318 = vunpack.c.h.b16 %v298
  %v319 = vunpack.c.l.b16 %v299
  %v320 = vunpack.c.h.b16 %v299
  %v321 = vunpack.c.l.b16 %v300
  %v322 = vunpack.c.h.b16 %v300
  %v323 = vunpack.c.l.b16 %v301
  %v324 = vunpack.c.h.b16 %v301
  %v325 = vunpack.c.l.b16 %v302
  %v326 = vunpack.c.h.b16 %v302
  %v327 = vpack.c.b16 %v311, %v311
  %v328 = vpack.c.b16 %v312, %v312
  %v329 = vpack.c.b16 %v313, %v313
  %v330 = vpack.c.b16 %v314, %v314
  %v331 = vpack.c.b16 %v315, %v315
  %v332 = vpack.c.b16 %v316, %v316
  %v333 = vpack.c.b16 %v317, %v317
  %v334 = vpack.c.b16 %v318, %v318
  %v335 = vpack.c.b16 %v319, %v319
  %v336 = vpack.c.b16 %v320, %v320
  %v337 = vpack.c.b16 %v321, %v321
  %v338 = vpack.c.b16 %v322, %v322
  %v339 = vpack.c.b16 %v323, %v323
  %v340 = vpack.c.b16 %v324, %v324
  %v341 = vpack.c.b16 %v325, %v325
  %v342 = vpack.c.b16 %v326, %v326
  %359 = vst [vmem:[%s3] sm:$0xf] %v327
  %360 = vst [vmem:[%s3 + $0x4] sm:$0xf] %v328
  %361 = vst [vmem:[%s3 + $0x8] sm:$0xf] %v329
  %362 = vst [vmem:[%s3 + $0xc] sm:$0xf] %v330
  %363 = vst [vmem:[%s3 + $0x10] sm:$0xf] %v331
  %364 = vst [vmem:[%s3 + $0x14] sm:$0xf] %v332
  %365 = vst [vmem:[%s3 + $0x18] sm:$0xf] %v333
  %366 = vst [vmem:[%s3 + $0x1c] sm:$0xf] %v334
  %367 = vst [vmem:[%s3 + $0x20] sm:$0xf] %v335
  %368 = vst [vmem:[%s3 + $0x24] sm:$0xf] %v336
  %369 = vst [vmem:[%s3 + $0x28] sm:$0xf] %v337
  %370 = vst [vmem:[%s3 + $0x2c] sm:$0xf] %v338
  %371 = vst [vmem:[%s3 + $0x30] sm:$0xf] %v339
  %372 = vst [vmem:[%s3 + $0x34] sm:$0xf] %v340
  %373 = vst [vmem:[%s3 + $0x38] sm:$0xf] %v341
  %374 = vst [vmem:[%s3 + $0x3c] sm:$0xf] %v342
  // Predicated region
  $region14: #{csp_darknet_block_forward.9} parent=0 // pred_check
    _
  $region15: #{csp_darknet_block_forward.9} parent=0 // pred_check_branch
    %376 = sbr.rel (0) target = $region17
  $region16: #{csp_darknet_block_forward.9} parent=0 // pred_region
    _
  $region17: #{csp_darknet_block_forward.9} parent=0 // pred_fallthru
    _
  // Predicated region
  $region18: #{csp_darknet_block_forward.9} parent=0 // pred_check
    _
  $region19: #{csp_darknet_block_forward.9} parent=0 // pred_check_branch
    %378 = sbr.rel (0) target = $region21
  $region20: #{csp_darknet_block_forward.9} parent=0 // pred_region
    _
  $region21: #{csp_darknet_block_forward.9} parent=0 // pred_fallthru
    _

// kernel: csp_darknet_block_forward.17
$region0: #{csp_darknet_block_forward.17}
  #allocation0 [shape = 'u32[]', space=smem, size = 0x4, offset = 0x4, fixed_abs, tag = 'smem constant byte address 0x4 - core index']
  #allocation1 [shape = 'u32[144,128]{1,0:T(1,128)}', space=vmem, size = 0x12000, scoped, tag = 'internal scratch']
  %s0 = inlined_call_operand.vmem [shape: bf16[128,256], index: 0, kind: input, shape index: {}]
  %s1 = inlined_call_operand.vmem [shape: bf16[256,128], index: 1, kind: input, shape index: {}]
  %s2 = inlined_call_operand.vmem [shape: f32[1,128], index: 2, kind: input, shape index: {}]
  %s3 = inlined_call_operand.vmem [shape: bf16[128,128], index: 3, kind: output, shape index: {}]
  %s4 = sld [smem:[#allocation0]]
  $region22: #{csp_darknet_block_forward.17} parent=0
    _
  %s6 = ssub.s32 1, %s4
  %s7 = scalar_select 0, %s6, %s4
  // Predicated region
  $region2: #{csp_darknet_block_forward.17} parent=0 // pred_check
    _
  $region3: #{csp_darknet_block_forward.17} parent=0 // pred_check_branch
    %9 = sbr.rel (0) target = $region5
  $region4: #{csp_darknet_block_forward.17} parent=0 // pred_region
    _
  $region5: #{csp_darknet_block_forward.17} parent=0 // pred_fallthru
    _
  // Predicated region
  $region6: #{csp_darknet_block_forward.17} parent=0 // pred_check
    _
  $region7: #{csp_darknet_block_forward.17} parent=0 // pred_check_branch
    %11 = sbr.rel (0) target = $region9
  $region8: #{csp_darknet_block_forward.17} parent=0 // pred_region
    _
  $region9: #{csp_darknet_block_forward.17} parent=0 // pred_fallthru
    _
  // Predicated region
  $region10: #{csp_darknet_block_forward.17} parent=0 // pred_check
    _
  $region11: #{csp_darknet_block_forward.17} parent=0 // pred_check_branch
    %13 = sbr.rel (0) target = $region13
  $region12: #{csp_darknet_block_forward.17} parent=0 // pred_region
    _
  $region13: #{csp_darknet_block_forward.17} parent=0 // pred_fallthru
    _
  %v15 = vld [vmem:[%s0] sm:$0xff]
  %v16 = vld [vmem:[%s0 + $0x8] sm:$0xff]
  %v17 = vld [vmem:[%s0 + $0x10] sm:$0xff]
  %v18 = vld [vmem:[%s0 + $0x18] sm:$0xff]
  %v19 = vld [vmem:[%s0 + $0x20] sm:$0xff]
  %v20 = vld [vmem:[%s0 + $0x28] sm:$0xff]
  %v21 = vld [vmem:[%s0 + $0x30] sm:$0xff]
  %v22 = vld [vmem:[%s0 + $0x38] sm:$0xff]
  %v23 = vld [vmem:[%s0 + $0x40] sm:$0xff]
  %v24 = vld [vmem:[%s0 + $0x48] sm:$0xff]
  %v25 = vld [vmem:[%s0 + $0x50] sm:$0xff]
  %v26 = vld [vmem:[%s0 + $0x58] sm:$0xff]
  %v27 = vld [vmem:[%s0 + $0x60] sm:$0xff]
  %v28 = vld [vmem:[%s0 + $0x68] sm:$0xff]
  %v29 = vld [vmem:[%s0 + $0x70] sm:$0xff]
  %v30 = vld [vmem:[%s0 + $0x78] sm:$0xff]
  %v31 = vld [vmem:[%s1] sm:$0xf]
  %v32 = vld [vmem:[%s1 + $0x4] sm:$0xf]
  %v33 = vld [vmem:[%s1 + $0x8] sm:$0xf]
  %v34 = vld [vmem:[%s1 + $0xc] sm:$0xf]
  %v35 = vld [vmem:[%s1 + $0x10] sm:$0xf]
  %v36 = vld [vmem:[%s1 + $0x14] sm:$0xf]
  %v37 = vld [vmem:[%s1 + $0x18] sm:$0xf]
  %v38 = vld [vmem:[%s1 + $0x1c] sm:$0xf]
  %v39 = vld [vmem:[%s1 + $0x20] sm:$0xf]
  %v40 = vld [vmem:[%s1 + $0x24] sm:$0xf]
  %v41 = vld [vmem:[%s1 + $0x28] sm:$0xf]
  %v42 = vld [vmem:[%s1 + $0x2c] sm:$0xf]
  %v43 = vld [vmem:[%s1 + $0x30] sm:$0xf]
  %v44 = vld [vmem:[%s1 + $0x34] sm:$0xf]
  %v45 = vld [vmem:[%s1 + $0x38] sm:$0xf]
  %v46 = vld [vmem:[%s1 + $0x3c] sm:$0xf]
  %v47 = vld [vmem:[%s1 + $0x40] sm:$0xf]
  %v48 = vld [vmem:[%s1 + $0x44] sm:$0xf]
  %v49 = vld [vmem:[%s1 + $0x48] sm:$0xf]
  %v50 = vld [vmem:[%s1 + $0x4c] sm:$0xf]
  %v51 = vld [vmem:[%s1 + $0x50] sm:$0xf]
  %v52 = vld [vmem:[%s1 + $0x54] sm:$0xf]
  %v53 = vld [vmem:[%s1 + $0x58] sm:$0xf]
  %v54 = vld [vmem:[%s1 + $0x5c] sm:$0xf]
  %v55 = vld [vmem:[%s1 + $0x60] sm:$0xf]
  %v56 = vld [vmem:[%s1 + $0x64] sm:$0xf]
  %v57 = vld [vmem:[%s1 + $0x68] sm:$0xf]
  %v58 = vld [vmem:[%s1 + $0x6c] sm:$0xf]
  %v59 = vld [vmem:[%s1 + $0x70] sm:$0xf]
  %v60 = vld [vmem:[%s1 + $0x74] sm:$0xf]
  %v61 = vld [vmem:[%s1 + $0x78] sm:$0xf]
  %v62 = vld [vmem:[%s1 + $0x7c] sm:$0xf]
  %v63 = vld [vmem:[%s2] sm:$0x1]
  %v65 = vlaneseq
  %v66 = vshrl.u32 %v65, 7
  %v67 = vsub.s32 0, %v66
  %v68 = vrot.slane %v63, %v67
  %v86 = vunpack.c.l.b16 %v15
  %v87 = vunpack.c.h.b16 %v15
  %v88 = vunpack.c.l.b16 %v16
  %v89 = vunpack.c.h.b16 %v16
  %v90 = vunpack.c.l.b16 %v17
  %v91 = vunpack.c.h.b16 %v17
  %v92 = vunpack.c.l.b16 %v18
  %v93 = vunpack.c.h.b16 %v18
  %v94 = vunpack.c.l.b16 %v19
  %v95 = vunpack.c.h.b16 %v19
  %v96 = vunpack.c.l.b16 %v20
  %v97 = vunpack.c.h.b16 %v20
  %v98 = vunpack.c.l.b16 %v21
  %v99 = vunpack.c.h.b16 %v21
  %v100 = vunpack.c.l.b16 %v22
  %v101 = vunpack.c.h.b16 %v22
  %v102 = vunpack.c.l.b16 %v23
  %v103 = vunpack.c.h.b16 %v23
  %v104 = vunpack.c.l.b16 %v24
  %v105 = vunpack.c.h.b16 %v24
  %v106 = vunpack.c.l.b16 %v25
  %v107 = vunpack.c.h.b16 %v25
  %v108 = vunpack.c.l.b16 %v26
  %v109 = vunpack.c.h.b16 %v26
  %v110 = vunpack.c.l.b16 %v27
  %v111 = vunpack.c.h.b16 %v27
  %v112 = vunpack.c.l.b16 %v28
  %v113 = vunpack.c.h.b16 %v28
  %v114 = vunpack.c.l.b16 %v29
  %v115 = vunpack.c.h.b16 %v29
  %v116 = vunpack.c.l.b16 %v30
  %v117 = vunpack.c.h.b16 %v30
  %v118 = vpack.c.b16 %v88, %v86
  %v119 = vpack.c.b16 %v89, %v87
  %v120 = vpack.c.b16 %v92, %v90
  %v121 = vpack.c.b16 %v93, %v91
  %v122 = vpack.c.b16 %v96, %v94
  %v123 = vpack.c.b16 %v97, %v95
  %v124 = vpack.c.b16 %v100, %v98
  %v125 = vpack.c.b16 %v101, %v99
  %v126 = vpack.c.b16 %v104, %v102
  %v127 = vpack.c.b16 %v105, %v103
  %v128 = vpack.c.b16 %v108, %v106
  %v129 = vpack.c.b16 %v109, %v107
  %v130 = vpack.c.b16 %v112, %v110
  %v131 = vpack.c.b16 %v113, %v111
  %v132 = vpack.c.b16 %v116, %v114
  %v133 = vpack.c.b16 %v117, %v115
  %v182 = vunpack.c.l.b16 %v31
  %v183 = vunpack.c.l.b16 %v32
  %v184 = vunpack.c.l.b16 %v33
  %v185 = vunpack.c.l.b16 %v34
  %v186 = vunpack.c.l.b16 %v35
  %v187 = vunpack.c.l.b16 %v36
  %v188 = vunpack.c.l.b16 %v37
  %v189 = vunpack.c.l.b16 %v38
  %v190 = vunpack.c.l.b16 %v39
  %v191 = vunpack.c.l.b16 %v40
  %v192 = vunpack.c.l.b16 %v41
  %v193 = vunpack.c.l.b16 %v42
  %v194 = vunpack.c.l.b16 %v43
  %v195 = vunpack.c.l.b16 %v44
  %v196 = vunpack.c.l.b16 %v45
  %v197 = vunpack.c.l.b16 %v46
  %v198 = vunpack.c.l.b16 %v47
  %v199 = vunpack.c.l.b16 %v48
  %v200 = vunpack.c.l.b16 %v49
  %v201 = vunpack.c.l.b16 %v50
  %v202 = vunpack.c.l.b16 %v51
  %v203 = vunpack.c.l.b16 %v52
  %v204 = vunpack.c.l.b16 %v53
  %v205 = vunpack.c.l.b16 %v54
  %v206 = vunpack.c.l.b16 %v55
  %v207 = vunpack.c.l.b16 %v56
  %v208 = vunpack.c.l.b16 %v57
  %v209 = vunpack.c.l.b16 %v58
  %v210 = vunpack.c.l.b16 %v59
  %v211 = vunpack.c.l.b16 %v60
  %v212 = vunpack.c.l.b16 %v61
  %v213 = vunpack.c.l.b16 %v62
  %v214 = vpack.c.b16 %v183, %v182
  %v215 = vpack.c.b16 %v185, %v184
  %v216 = vpack.c.b16 %v187, %v186
  %v217 = vpack.c.b16 %v189, %v188
  %v218 = vpack.c.b16 %v191, %v190
  %v219 = vpack.c.b16 %v193, %v192
  %v220 = vpack.c.b16 %v195, %v194
  %v221 = vpack.c.b16 %v197, %v196
  %v222 = vpack.c.b16 %v199, %v198
  %v223 = vpack.c.b16 %v201, %v200
  %v224 = vpack.c.b16 %v203, %v202
  %v225 = vpack.c.b16 %v205, %v204
  %v226 = vpack.c.b16 %v207, %v206
  %v227 = vpack.c.b16 %v209, %v208
  %v228 = vpack.c.b16 %v211, %v210
  %v229 = vpack.c.b16 %v213, %v212
  %246 = vmatprep.subr.bf16.mxu0 0
  %247 = vmatpush1.bf16.msra.mxu0 %v214
  %248 = vmatprep.subr.bf16.mxu0 0
  %249 = vmatpush1.bf16.msra.mxu0 %v215
  %250 = vmatprep.subr.bf16.mxu0 0
  %251 = vmatpush1.bf16.msra.mxu0 %v216
  %252 = vmatprep.subr.bf16.mxu0 0
  %253 = vmatpush1.bf16.msra.mxu0 %v217
  %254 = vmatprep.subr.bf16.mxu0 0
  %255 = vmatpush1.bf16.msra.mxu0 %v218
  %256 = vmatprep.subr.bf16.mxu0 0
  %257 = vmatpush1.bf16.msra.mxu0 %v219
  %258 = vmatprep.subr.bf16.mxu0 0
  %259 = vmatpush1.bf16.msra.mxu0 %v220
  %260 = vmatprep.subr.bf16.mxu0 0
  %261 = vmatpush1.bf16.msra.mxu0 %v221
  %262 = vmatprep.subr.bf16.mxu0 0
  %263 = vmatpush1.bf16.msra.mxu0 %v222
  %264 = vmatprep.subr.bf16.mxu0 0
  %265 = vmatpush1.bf16.msra.mxu0 %v223
  %266 = vmatprep.subr.bf16.mxu0 0
  %267 = vmatpush1.bf16.msra.mxu0 %v224
  %268 = vmatprep.subr.bf16.mxu0 0
  %269 = vmatpush1.bf16.msra.mxu0 %v225
  %270 = vmatprep.subr.bf16.mxu0 0
  %271 = vmatpush1.bf16.msra.mxu0 %v226
  %272 = vmatprep.subr.bf16.mxu0 0
  %273 = vmatpush1.bf16.msra.mxu0 %v227
  %274 = vmatprep.subr.bf16.mxu0 0
  %275 = vmatpush1.bf16.msra.mxu0 %v228
  %276 = vmatprep.subr.bf16.mxu0 0
  %277 = vmatpush1.bf16.msra.mxu0 %v229
  %278 = vmatprep.mubr.bf16.mxu0 %v119
  %279 = vmatmul.mubr.bf16.gmra.mrb[0].mxu0 %v118
  %v280 = vpop.f32.mrb[0].mxu0
  %v281 = vadd.f32 %v68, %v280
  %v282 = vpop.f32.mrb[0].mxu0
  %v283 = vpop.f32.mrb[0].mxu0
  %v284 = vadd.f32 %v68, %v283
  %v285 = vpop.f32.mrb[0].mxu0
  %286 = vmatprep.mubr.bf16.mxu0 %v121
  %287 = vmatmul.mubr.bf16.gmra.mrb[0].mxu0 %v120
  %v288 = vpop.f32.mrb[0].mxu0
  %v289 = vadd.f32 %v68, %v288
  %v290 = vpop.f32.mrb[0].mxu0
  %v291 = vpop.f32.mrb[0].mxu0
  %v292 = vadd.f32 %v68, %v291
  %v293 = vpop.f32.mrb[0].mxu0
  %294 = vmatprep.mubr.bf16.mxu0 %v123
  %295 = vmatmul.mubr.bf16.gmra.mrb[0].mxu0 %v122
  %v296 = vpop.f32.mrb[0].mxu0
  %v297 = vadd.f32 %v68, %v296
  %v298 = vpop.f32.mrb[0].mxu0
  %v299 = vpop.f32.mrb[0].mxu0
  %v300 = vadd.f32 %v68, %v299
  %v301 = vpop.f32.mrb[0].mxu0
  %302 = vmatprep.mubr.bf16.mxu0 %v125
  %303 = vmatmul.mubr.bf16.gmra.mrb[0].mxu0 %v124
  %v304 = vpop.f32.mrb[0].mxu0
  %v305 = vadd.f32 %v68, %v304
  %v306 = vpop.f32.mrb[0].mxu0
  %v307 = vpop.f32.mrb[0].mxu0
  %v308 = vadd.f32 %v68, %v307
  %v309 = vpop.f32.mrb[0].mxu0
  %310 = vmatprep.mubr.bf16.mxu0 %v127
  %311 = vmatmul.mubr.bf16.gmra.mrb[0].mxu0 %v126
  %v312 = vpop.f32.mrb[0].mxu0
  %v313 = vadd.f32 %v68, %v312
  %v314 = vpop.f32.mrb[0].mxu0
  %v315 = vpop.f32.mrb[0].mxu0
  %v316 = vadd.f32 %v68, %v315
  %v317 = vpop.f32.mrb[0].mxu0
  %318 = vmatprep.mubr.bf16.mxu0 %v129
  %319 = vmatmul.mubr.bf16.gmra.mrb[0].mxu0 %v128
  %v320 = vpop.f32.mrb[0].mxu0
  %v321 = vadd.f32 %v68, %v320
  %v322 = vpop.f32.mrb[0].mxu0
  %v323 = vpop.f32.mrb[0].mxu0
  %v324 = vadd.f32 %v68, %v323
  %v325 = vpop.f32.mrb[0].mxu0
  %326 = vmatprep.mubr.bf16.mxu0 %v131
  %327 = vmatmul.mubr.bf16.gmra.mrb[0].mxu0 %v130
  %v328 = vpop.f32.mrb[0].mxu0
  %v329 = vadd.f32 %v68, %v328
  %v330 = vpop.f32.mrb[0].mxu0
  %v331 = vpop.f32.mrb[0].mxu0
  %v332 = vadd.f32 %v68, %v331
  %v333 = vpop.f32.mrb[0].mxu0
  %334 = vmatprep.mubr.bf16.mxu0 %v133
  %335 = vmatmul.mubr.bf16.gmra.mrb[0].mxu0 %v132
  %v336 = vpop.f32.mrb[0].mxu0
  %v337 = vadd.f32 %v68, %v336
  %v338 = vpop.f32.mrb[0].mxu0
  %v339 = vpop.f32.mrb[0].mxu0
  %v340 = vadd.f32 %v68, %v339
  %v341 = vpop.f32.mrb[0].mxu0
  %342 = vdwg.mxu0
  %vm343 = vcmp.ge.f32.partialorder %v281, 0.0
  %vm344 = vcmp.ge.f32.partialorder %v284, 0.0
  %vm345 = vcmp.ge.f32.partialorder %v289, 0.0
  %vm346 = vcmp.ge.f32.partialorder %v292, 0.0
  %vm347 = vcmp.ge.f32.partialorder %v297, 0.0
  %vm348 = vcmp.ge.f32.partialorder %v300, 0.0
  %vm349 = vcmp.ge.f32.partialorder %v305, 0.0
  %vm350 = vcmp.ge.f32.partialorder %v308, 0.0
  %vm351 = vcmp.ge.f32.partialorder %v313, 0.0
  %vm352 = vcmp.ge.f32.partialorder %v316, 0.0
  %vm353 = vcmp.ge.f32.partialorder %v321, 0.0
  %vm354 = vcmp.ge.f32.partialorder %v324, 0.0
  %vm355 = vcmp.ge.f32.partialorder %v329, 0.0
  %vm356 = vcmp.ge.f32.partialorder %v332, 0.0
  %vm357 = vcmp.ge.f32.partialorder %v337, 0.0
  %vm358 = vcmp.ge.f32.partialorder %v340, 0.0
  %v359 = vmul.f32 %v281, 0.1
  %v360 = vmul.f32 %v284, 0.1
  %v361 = vmul.f32 %v289, 0.1
  %v362 = vmul.f32 %v292, 0.1
  %v363 = vmul.f32 %v297, 0.1
  %v364 = vmul.f32 %v300, 0.1
  %v365 = vmul.f32 %v305, 0.1
  %v366 = vmul.f32 %v308, 0.1
  %v367 = vmul.f32 %v313, 0.1
  %v368 = vmul.f32 %v316, 0.1
  %v369 = vmul.f32 %v321, 0.1
  %v370 = vmul.f32 %v324, 0.1
  %v371 = vmul.f32 %v329, 0.1
  %v372 = vmul.f32 %v332, 0.1
  %v373 = vmul.f32 %v337, 0.1
  %v374 = vmul.f32 %v340, 0.1
  %v375 = vsel %vm343, %v281, %v359
  %v376 = vsel %vm344, %v284, %v360
  %v377 = vsel %vm345, %v289, %v361
  %v378 = vsel %vm346, %v292, %v362
  %v379 = vsel %vm347, %v297, %v363
  %v380 = vsel %vm348, %v300, %v364
  %v381 = vsel %vm349, %v305, %v365
  %v382 = vsel %vm350, %v308, %v366
  %v383 = vsel %vm351, %v313, %v367
  %v384 = vsel %vm352, %v316, %v368
  %v385 = vsel %vm353, %v321, %v369
  %v386 = vsel %vm354, %v324, %v370
  %v387 = vsel %vm355, %v329, %v371
  %v388 = vsel %vm356, %v332, %v372
  %v389 = vsel %vm357, %v337, %v373
  %v390 = vsel %vm358, %v340, %v374
  %v391 = vpack.c.bf16 %v376, %v375
  %v392 = vpack.c.bf16 %v378, %v377
  %v393 = vpack.c.bf16 %v380, %v379
  %v394 = vpack.c.bf16 %v382, %v381
  %v395 = vpack.c.bf16 %v384, %v383
  %v396 = vpack.c.bf16 %v386, %v385
  %v397 = vpack.c.bf16 %v388, %v387
  %v398 = vpack.c.bf16 %v390, %v389
  %v407 = vunpack.c.l.b16 %v391
  %v408 = vunpack.c.h.b16 %v391
  %v409 = vunpack.c.l.b16 %v392
  %v410 = vunpack.c.h.b16 %v392
  %v411 = vunpack.c.l.b16 %v393
  %v412 = vunpack.c.h.b16 %v393
  %v413 = vunpack.c.l.b16 %v394
  %v414 = vunpack.c.h.b16 %v394
  %v415 = vunpack.c.l.b16 %v395
  %v416 = vunpack.c.h.b16 %v395
  %v417 = vunpack.c.l.b16 %v396
  %v418 = vunpack.c.h.b16 %v396
  %v419 = vunpack.c.l.b16 %v397
  %v420 = vunpack.c.h.b16 %v397
  %v421 = vunpack.c.l.b16 %v398
  %v422 = vunpack.c.h.b16 %v398
  %v423 = vpack.c.b16 %v407, %v407
  %v424 = vpack.c.b16 %v408, %v408
  %v425 = vpack.c.b16 %v409, %v409
  %v426 = vpack.c.b16 %v410, %v410
  %v427 = vpack.c.b16 %v411, %v411
  %v428 = vpack.c.b16 %v412, %v412
  %v429 = vpack.c.b16 %v413, %v413
  %v430 = vpack.c.b16 %v414, %v414
  %v431 = vpack.c.b16 %v415, %v415
  %v432 = vpack.c.b16 %v416, %v416
  %v433 = vpack.c.b16 %v417, %v417
  %v434 = vpack.c.b16 %v418, %v418
  %v435 = vpack.c.b16 %v419, %v419
  %v436 = vpack.c.b16 %v420, %v420
  %v437 = vpack.c.b16 %v421, %v421
  %v438 = vpack.c.b16 %v422, %v422
  %455 = vst [vmem:[%s3] sm:$0xf] %v423
  %456 = vst [vmem:[%s3 + $0x4] sm:$0xf] %v424
  %457 = vst [vmem:[%s3 + $0x8] sm:$0xf] %v425
  %458 = vst [vmem:[%s3 + $0xc] sm:$0xf] %v426
  %459 = vst [vmem:[%s3 + $0x10] sm:$0xf] %v427
  %460 = vst [vmem:[%s3 + $0x14] sm:$0xf] %v428
  %461 = vst [vmem:[%s3 + $0x18] sm:$0xf] %v429
  %462 = vst [vmem:[%s3 + $0x1c] sm:$0xf] %v430
  %463 = vst [vmem:[%s3 + $0x20] sm:$0xf] %v431
  %464 = vst [vmem:[%s3 + $0x24] sm:$0xf] %v432
  %465 = vst [vmem:[%s3 + $0x28] sm:$0xf] %v433
  %466 = vst [vmem:[%s3 + $0x2c] sm:$0xf] %v434
  %467 = vst [vmem:[%s3 + $0x30] sm:$0xf] %v435
  %468 = vst [vmem:[%s3 + $0x34] sm:$0xf] %v436
  %469 = vst [vmem:[%s3 + $0x38] sm:$0xf] %v437
  %470 = vst [vmem:[%s3 + $0x3c] sm:$0xf] %v438
  // Predicated region
  $region14: #{csp_darknet_block_forward.17} parent=0 // pred_check
    _
  $region15: #{csp_darknet_block_forward.17} parent=0 // pred_check_branch
    %472 = sbr.rel (0) target = $region17
  $region16: #{csp_darknet_block_forward.17} parent=0 // pred_region
    _
  $region17: #{csp_darknet_block_forward.17} parent=0 // pred_fallthru
    _
  // Predicated region
  $region18: #{csp_darknet_block_forward.17} parent=0 // pred_check
    _
  $region19: #{csp_darknet_block_forward.17} parent=0 // pred_check_branch
    %474 = sbr.rel (0) target = $region21
  $region20: #{csp_darknet_block_forward.17} parent=0 // pred_region
    _
  $region21: #{csp_darknet_block_forward.17} parent=0 // pred_fallthru
    _

// kernel: csp_darknet_block_forward.12
$region0: #{csp_darknet_block_forward.12}
  #allocation0 [shape = 'u32[]', space=smem, size = 0x4, offset = 0x4, fixed_abs, tag = 'smem constant byte address 0x4 - core index']
  #allocation1 [shape = 'u32[144,128]{1,0:T(1,128)}', space=vmem, size = 0x12000, scoped, tag = 'internal scratch']
  %s0 = inlined_call_operand.vmem [shape: bf16[2,80,384], index: 0, kind: input, shape index: {}]
  %s1 = inlined_call_operand.vmem [shape: bf16[3,384,128], index: 1, kind: input, shape index: {}]
  %s2 = inlined_call_operand.vmem [shape: f32[1,128], index: 2, kind: input, shape index: {}]
  %s3 = inlined_call_operand.vmem [shape: bf16[2,64,128], index: 3, kind: input, shape index: {}]
  %s4 = inlined_call_operand.vmem [shape: bf16[2,64,128], index: 4, kind: output, shape index: {}]
  %s5 = sld [smem:[#allocation0]]
  $region49: #{csp_darknet_block_forward.12} parent=0
    _
  %s7 = ssub.s32 1, %s5
  %s8 = scalar_select 0, %s7, %s5
  loop: start=0, step=1, limit=4
  $region2: #{csp_darknet_block_forward.12} parent=0 // loop_pre_header
    _
  $region3: #{csp_darknet_block_forward.12} parent=0 // loop_header
    %s10 = sphi 0, %s14
    %p11 = scmp.ge.s32.totalorder %s10, 4
    %s17 = sphi 0, %s29
    %s18 = sphi 0, %s25
    %s19 = sphi 0, %s17
    %s20 = sphi 0, %s18
    %s21 = sphi 0, %s19
    %s22 = sphi 0, %s20
    %s32 = sphi 0, %s34
    %s35 = sphi 0, %s32
    %s36 = sphi 0, %s35
    %s52 = sphi 0, %s36
    %s58 = sphi 0, %s60
    %s61 = sphi 0, %s58
    %s62 = sphi 0, %s61
    %s78 = sphi 0, %s62
    %s84 = sphi 0, %s86
    %s87 = sphi 0, %s84
    %s88 = sphi 0, %s87
    %s104 = sphi 0, %s88
    %s112 = sphi 0, %s114
    %s115 = sphi 0, %s112
    %s116 = sphi 0, %s115
    %s132 = sphi 0, %s116
    %s140 = sphi 0, %s142
    %s143 = sphi 0, %s140
    %s144 = sphi 0, %s143
    %s160 = sphi 0, %s144
  $region4: #{csp_darknet_block_forward.12} parent=0 // loop_header_branch
    %13 = sbr.rel (%p11) target = $region8
  $region5: #{csp_darknet_block_forward.12} parent=0 // loop_body
    %s15 = ssub.s32 %s10, 1
    %s16 = ssub.s32 %s10, 2
    %s23 = sadd.s32 1, %s18
    %p24 = scmp.ge.s32.totalorder %s23, 1
    %s25 = scalar_select %p24, 0, %s23
    %s26 = sadd.s32 1, %s17
    %s27 = scalar_select %p24, %s26, %s17
    %p28 = scmp.ge.s32.totalorder %s27, 2
    %s29 = scalar_select %p28, 0, %s27
    %s30 = ssub.s32 %s17, %s29
    %p31 = scmp.eq.s32.totalorder %s30, 0
    %s33 = sadd.s32 %s32, 1
    %s34 = scalar_select %p31, %s32, %s33
    %p37 = pneg %p31
    %p38 = scmp.eq.s32.totalorder %s10, 1
    %p39 = por %p37, %p38
    %p40 = scmp.ne.s32.totalorder %s32, %s35
    %p41 = scmp.eq.s32.totalorder %s10, 0
    %p42 = por %p40, %p41
    %p43 = scmp.ne.s32.totalorder %s32, %s35
    %p44 = scmp.eq.s32.totalorder %s15, 1
    %p45 = por %p43, %p44
    %p46 = scmp.ne.s32.totalorder %s35, %s36
    %p47 = scmp.eq.s32.totalorder %s15, 0
    %p48 = por %p46, %p47
    %p49 = scmp.ne.s32.totalorder %s35, %s36
    %p50 = scmp.eq.s32.totalorder %s16, 1
    %p51 = por %p49, %p50
    %p53 = scmp.ne.s32.totalorder %s36, %s52
    %p54 = scmp.eq.s32.totalorder %s16, 0
    %p55 = por %p53, %p54
    %s56 = ssub.s32 %s18, %s25
    %p57 = scmp.eq.s32.totalorder %s56, 0
    %s59 = sadd.s32 %s58, 1
    %s60 = scalar_select %p57, %s58, %s59
    %p63 = pneg %p57
    %p64 = scmp.eq.s32.totalorder %s10, 1
    %p65 = por %p63, %p64
    %p66 = scmp.ne.s32.totalorder %s58, %s61
    %p67 = scmp.eq.s32.totalorder %s10, 0
    %p68 = por %p66, %p67
    %p69 = scmp.ne.s32.totalorder %s58, %s61
    %p70 = scmp.eq.s32.totalorder %s15, 1
    %p71 = por %p69, %p70
    %p72 = scmp.ne.s32.totalorder %s61, %s62
    %p73 = scmp.eq.s32.totalorder %s15, 0
    %p74 = por %p72, %p73
    %p75 = scmp.ne.s32.totalorder %s61, %s62
    %p76 = scmp.eq.s32.totalorder %s16, 1
    %p77 = por %p75, %p76
    %p79 = scmp.ne.s32.totalorder %s62, %s78
    %p80 = scmp.eq.s32.totalorder %s16, 0
    %p81 = por %p79, %p80
    %s82 = ssub.s32 %s18, %s25
    %p83 = scmp.eq.s32.totalorder %s82, 0
    %s85 = sadd.s32 %s84, 1
    %s86 = scalar_select %p83, %s84, %s85
    %p89 = pneg %p83
    %p90 = scmp.eq.s32.totalorder %s10, 1
    %p91 = por %p89, %p90
    %p92 = scmp.ne.s32.totalorder %s84, %s87
    %p93 = scmp.eq.s32.totalorder %s10, 0
    %p94 = por %p92, %p93
    %p95 = scmp.ne.s32.totalorder %s84, %s87
    %p96 = scmp.eq.s32.totalorder %s15, 1
    %p97 = por %p95, %p96
    %p98 = scmp.ne.s32.totalorder %s87, %s88
    %p99 = scmp.eq.s32.totalorder %s15, 0
    %p100 = por %p98, %p99
    %p101 = scmp.ne.s32.totalorder %s87, %s88
    %p102 = scmp.eq.s32.totalorder %s16, 1
    %p103 = por %p101, %p102
    %p105 = scmp.ne.s32.totalorder %s88, %s104
    %p106 = scmp.eq.s32.totalorder %s16, 0
    %p107 = por %p105, %p106
    %s108 = ssub.s32 %s17, %s29
    %s109 = ssub.s32 %s18, %s25
    %s110 = sor.u32 %s108, %s109
    %p111 = scmp.eq.s32.totalorder %s110, 0
    %s113 = sadd.s32 %s112, 1
    %s114 = scalar_select %p111, %s112, %s113
    %p117 = pneg %p111
    %p118 = scmp.eq.s32.totalorder %s10, 1
    %p119 = por %p117, %p118
    %p120 = scmp.ne.s32.totalorder %s112, %s115
    %p121 = scmp.eq.s32.totalorder %s10, 0
    %p122 = por %p120, %p121
    %p123 = scmp.ne.s32.totalorder %s112, %s115
    %p124 = scmp.eq.s32.totalorder %s15, 1
    %p125 = por %p123, %p124
    %p126 = scmp.ne.s32.totalorder %s115, %s116
    %p127 = scmp.eq.s32.totalorder %s15, 0
    %p128 = por %p126, %p127
    %p129 = scmp.ne.s32.totalorder %s115, %s116
    %p130 = scmp.eq.s32.totalorder %s16, 1
    %p131 = por %p129, %p130
    %p133 = scmp.ne.s32.totalorder %s116, %s132
    %p134 = scmp.eq.s32.totalorder %s16, 0
    %p135 = por %p133, %p134
    %s136 = ssub.s32 %s17, %s29
    %s137 = ssub.s32 %s18, %s25
    %s138 = sor.u32 %s136, %s137
    %p139 = scmp.eq.s32.totalorder %s138, 0
    %s141 = sadd.s32 %s140, 1
    %s142 = scalar_select %p139, %s140, %s141
    %p145 = pneg %p139
    %p146 = scmp.eq.s32.totalorder %s10, 1
    %p147 = por %p145, %p146
    %p148 = scmp.ne.s32.totalorder %s140, %s143
    %p149 = scmp.eq.s32.totalorder %s10, 0
    %p150 = por %p148, %p149
    %p151 = scmp.ne.s32.totalorder %s140, %s143
    %p152 = scmp.eq.s32.totalorder %s15, 1
    %p153 = por %p151, %p152
    %p154 = scmp.ne.s32.totalorder %s143, %s144
    %p155 = scmp.eq.s32.totalorder %s15, 0
    %p156 = por %p154, %p155
    %p157 = scmp.ne.s32.totalorder %s143, %s144
    %p158 = scmp.eq.s32.totalorder %s16, 1
    %p159 = por %p157, %p158
    %p161 = scmp.ne.s32.totalorder %s144, %s160
    %p162 = scmp.eq.s32.totalorder %s16, 0
    %p163 = por %p161, %p162
    %p164 = scmp.le.s32.totalorder 1, %s10
    %p165 = scmp.lt.s32.totalorder %s10, 3
    %p166 = pnand %p164, %p165
    %p167 = pneg %p166
    // Predicated region
    $region9: #{csp_darknet_block_forward.12} parent=5 // pred_check
      _
    $region10: #{csp_darknet_block_forward.12} parent=5 // pred_check_branch
      %169 = sbr.rel (%p166) target = $region12
    $region11: #{csp_darknet_block_forward.12} parent=5 // pred_region
      %s170 = ssub.s32 %s10, 1
      // Predicated region
      $region13: #{csp_darknet_block_forward.12} parent=11 // pred_check
        %p171 = pneg %p74
      $region14: #{csp_darknet_block_forward.12} parent=11 // pred_check_branch
        %173 = sbr.rel (%p171) target = $region16
      $region15: #{csp_darknet_block_forward.12} parent=11 // pred_region
        %p174 = scmp.lt.s32.totalorder %s20, 0
        %s175 = scalar_select %p174, %s20, 0
        %s176 = smul.addr %s175, 4
        %s177 = scalar_lea.vmem %s1, %s176
      $region16: #{csp_darknet_block_forward.12} parent=11 // pred_fallthru
        _
      // Predicated region
      $region17: #{csp_darknet_block_forward.12} parent=11 // pred_check
        %p178 = pneg %p100
      $region18: #{csp_darknet_block_forward.12} parent=11 // pred_check_branch
        %180 = sbr.rel (%p178) target = $region20
      $region19: #{csp_darknet_block_forward.12} parent=11 // pred_region
        %p181 = scmp.lt.s32.totalorder %s20, 0
        %s182 = scalar_select %p181, %s20, 0
        %s183 = scalar_lea.vmem %s2, %s182
      $region20: #{csp_darknet_block_forward.12} parent=11 // pred_fallthru
        _
    $region12: #{csp_darknet_block_forward.12} parent=5 // pred_fallthru
      _
    %p184 = scmp.lt.s32.totalorder %s10, 2
    // Predicated region
    $region21: #{csp_darknet_block_forward.12} parent=5 // pred_check
      %p185 = pneg %p184
    $region22: #{csp_darknet_block_forward.12} parent=5 // pred_check_branch
      %187 = sbr.rel (%p185) target = $region24
    $region23: #{csp_darknet_block_forward.12} parent=5 // pred_region
      // Predicated region
      $region25: #{csp_darknet_block_forward.12} parent=23 // pred_check
        %p188 = pneg %p42
      $region26: #{csp_darknet_block_forward.12} parent=23 // pred_check_branch
        %190 = sbr.rel (%p188) target = $region28
      $region27: #{csp_darknet_block_forward.12} parent=23 // pred_region
        %p191 = scmp.lt.s32.totalorder %s17, 1
        %s192 = scalar_select %p191, %s17, 1
        %s193 = smul.addr %s192, 30
        %s194 = smul.addr %s193, 4
        %s195 = scalar_lea.vmem %s0, %s194
      $region28: #{csp_darknet_block_forward.12} parent=23 // pred_fallthru
        _
      // Predicated region
      $region29: #{csp_darknet_block_forward.12} parent=23 // pred_check
        %p196 = pneg %p122
      $region30: #{csp_darknet_block_forward.12} parent=23 // pred_check_branch
        %198 = sbr.rel (%p196) target = $region32
      $region31: #{csp_darknet_block_forward.12} parent=23 // pred_region
        %p199 = scmp.lt.s32.totalorder %s17, 1
        %s200 = scalar_select %p199, %s17, 1
        %p201 = scmp.lt.s32.totalorder %s18, 0
        %s202 = scalar_select %p201, %s18, 0
        %s203 = smul.addr %s200, 8
        %s204 = sadd.s32 %s202, %s203
        %s205 = smul.addr %s204, 4
        %s206 = scalar_lea.vmem %s3, %s205
      $region32: #{csp_darknet_block_forward.12} parent=23 // pred_fallthru
        _
    $region24: #{csp_darknet_block_forward.12} parent=5 // pred_fallthru
      _
    %p207 = scmp.le.s32.totalorder 1, %s10
    %p208 = scmp.lt.s32.totalorder %s10, 3
    %p209 = pnand %p207, %p208
    %p210 = pneg %p209
    // Predicated region
    $region33: #{csp_darknet_block_forward.12} parent=5 // pred_check
      _
    $region34: #{csp_darknet_block_forward.12} parent=5 // pred_check_branch
      %212 = sbr.rel (%p209) target = $region36
    $region35: #{csp_darknet_block_forward.12} parent=5 // pred_region
      %s213 = ssub.s32 %s10, 1
      %p214 = scmp.lt.s32.totalorder %s19, 1
      %s215 = scalar_select %p214, %s19, 1
      %s216 = smul.addr %s215, 30
      %s217 = smul.addr %s216, 4
      %s218 = scalar_lea.vmem %s0, %s217
      %p219 = pneg %p48
      %p220 = pneg %p45
      %p221 = scmp.lt.s32.totalorder %s20, 0
      %s222 = scalar_select %p221, %s20, 0
      %s223 = smul.addr %s222, 4
      %s224 = scalar_lea.vmem %s1, %s223
      %p225 = pneg %p74
      %p226 = pneg %p71
      %p227 = scmp.lt.s32.totalorder %s20, 0
      %s228 = scalar_select %p227, %s20, 0
      %s229 = scalar_lea.vmem %s2, %s228
      %p230 = pneg %p100
      %p231 = pneg %p97
      %p232 = scmp.lt.s32.totalorder %s19, 1
      %s233 = scalar_select %p232, %s19, 1
      %p234 = scmp.lt.s32.totalorder %s20, 0
      %s235 = scalar_select %p234, %s20, 0
      %s236 = smul.addr %s233, 8
      %s237 = sadd.s32 %s235, %s236
      %s238 = smul.addr %s237, 4
      %s239 = scalar_lea.vmem %s3, %s238
      %p240 = pneg %p128
      %p241 = pneg %p125
      %p242 = pneg %p156
      %p243 = pneg %p153
      %p244 = scmp.lt.s32.totalorder %s19, 1
      %s245 = scalar_select %p244, %s19, 1
      %p246 = scmp.lt.s32.totalorder %s20, 0
      %s247 = scalar_select %p246, %s20, 0
      %s248 = smul.addr %s245, 8
      %s249 = sadd.s32 %s247, %s248
      %s250 = smul.addr %s249, 4
      %s251 = scalar_lea.vmem %s4, %s250
      %p252 = scmp.lt.s32.totalorder %s19, 1
      %s253 = scalar_select %p252, %s19, 1
      %s254 = smul.addr %s253, 30
      %s255 = smul.addr %s254, 4
      %s256 = scalar_lea.vmem %s0, %s255
      %p257 = scmp.lt.s32.totalorder %s20, 0
      %s258 = scalar_select %p257, %s20, 0
      %s259 = smul.addr %s258, 4
      %s260 = scalar_lea.vmem %s1, %s259
      %p261 = scmp.lt.s32.totalorder %s20, 0
      %s262 = scalar_select %p261, %s20, 0
      %s263 = scalar_lea.vmem %s2, %s262
      %p264 = scmp.lt.s32.totalorder %s19, 1
      %s265 = scalar_select %p264, %s19, 1
      %p266 = scmp.lt.s32.totalorder %s20, 0
      %s267 = scalar_select %p266, %s20, 0
      %s268 = smul.addr %s265, 8
      %s269 = sadd.s32 %s267, %s268
      %s270 = smul.addr %s269, 4
      %s271 = scalar_lea.vmem %s3, %s270
      %p272 = scmp.lt.s32.totalorder %s19, 1
      %s273 = scalar_select %p272, %s19, 1
      %p274 = scmp.lt.s32.totalorder %s20, 0
      %s275 = scalar_select %p274, %s20, 0
      %s276 = smul.addr %s273, 8
      %s277 = sadd.s32 %s275, %s276
      %s278 = smul.addr %s277, 4
      %s279 = scalar_lea.vmem %s4, %s278
      %v281 = vld [vmem:[%s256] sm:$0xff]
      %v282 = vld [vmem:[%s256 + $0x8] sm:$0xf]
      %v283 = vld [vmem:[%s256 + $0xc] sm:$0xff]
      %v284 = vld [vmem:[%s256 + $0x14] sm:$0xf]
      %v285 = vld [vmem:[%s256 + $0x18] sm:$0xff]
      %v286 = vld [vmem:[%s256 + $0x20] sm:$0xf]
      %v287 = vld [vmem:[%s256 + $0x24] sm:$0xff]
      %v288 = vld [vmem:[%s256 + $0x2c] sm:$0xf]
      %v289 = vld [vmem:[%s256 + $0x30] sm:$0xff]
      %v290 = vld [vmem:[%s256 + $0x38] sm:$0xf]
      %v291 = vld [vmem:[%s256 + $0x3c] sm:$0xff]
      %v292 = vld [vmem:[%s256 + $0x44] sm:$0xf]
      %v293 = vld [vmem:[%s256 + $0x48] sm:$0xff]
      %v294 = vld [vmem:[%s256 + $0x50] sm:$0xf]
      %v295 = vld [vmem:[%s256 + $0x54] sm:$0xff]
      %v296 = vld [vmem:[%s256 + $0x5c] sm:$0xf]
      %v297 = vld [vmem:[%s260] sm:$0xf]
      %v298 = vld [vmem:[%s260 + $0x4] sm:$0xf]
      %v299 = vld [vmem:[%s260 + $0x8] sm:$0xf]
      %v300 = vld [vmem:[%s260 + $0xc] sm:$0xf]
      %v301 = vld [vmem:[%s260 + $0x10] sm:$0xf]
      %v302 = vld [vmem:[%s260 + $0x14] sm:$0xf]
      %v303 = vld [vmem:[%s260 + $0x18] sm:$0xf]
      %v304 = vld [vmem:[%s260 + $0x1c] sm:$0xf]
      %v305 = vld [vmem:[%s260 + $0x20] sm:$0xf]
      %v306 = vld [vmem:[%s260 + $0x24] sm:$0xf]
      %v307 = vld [vmem:[%s260 + $0x28] sm:$0xf]
      %v308 = vld [vmem:[%s260 + $0x2c] sm:$0xf]
      %v309 = vld [vmem:[%s260 + $0x30] sm:$0xf]
      %v310 = vld [vmem:[%s260 + $0x34] sm:$0xf]
      %v311 = vld [vmem:[%s260 + $0x38] sm:$0xf]
      %v312 = vld [vmem:[%s260 + $0x3c] sm:$0xf]
      %v313 = vld [vmem:[%s260 + $0x40] sm:$0xf]
      %v314 = vld [vmem:[%s260 + $0x44] sm:$0xf]
      %v315 = vld [vmem:[%s260 + $0x48] sm:$0xf]
      %v316 = vld [vmem:[%s260 + $0x4c] sm:$0xf]
      %v317 = vld [vmem:[%s260 + $0x50] sm:$0xf]
      %v318 = vld [vmem:[%s260 + $0x54] sm:$0xf]
      %v319 = vld [vmem:[%s260 + $0x58] sm:$0xf]
      %v320 = vld [vmem:[%s260 + $0x5c] sm:$0xf]
      %v321 = vld [vmem:[%s260 + $0x60] sm:$0xf]
      %v322 = vld [vmem:[%s260 + $0x64] sm:$0xf]
      %v323 = vld [vmem:[%s260 + $0x68] sm:$0xf]
      %v324 = vld [vmem:[%s260 + $0x6c] sm:$0xf]
      %v325 = vld [vmem:[%s260 + $0x70] sm:$0xf]
      %v326 = vld [vmem:[%s260 + $0x74] sm:$0xf]
      %v327 = vld [vmem:[%s260 + $0x78] sm:$0xf]
      %v328 = vld [vmem:[%s260 + $0x7c] sm:$0xf]
      %v329 = vld [vmem:[%s260 + $0x80] sm:$0xf]
      %v330 = vld [vmem:[%s260 + $0x84] sm:$0xf]
      %v331 = vld [vmem:[%s260 + $0x88] sm:$0xf]
      %v332 = vld [vmem:[%s260 + $0x8c] sm:$0xf]
      %v333 = vld [vmem:[%s260 + $0x90] sm:$0xf]
      %v334 = vld [vmem:[%s260 + $0x94] sm:$0xf]
      %v335 = vld [vmem:[%s260 + $0x98] sm:$0xf]
      %v336 = vld [vmem:[%s260 + $0x9c] sm:$0xf]
      %v337 = vld [vmem:[%s260 + $0xa0] sm:$0xf]
      %v338 = vld [vmem:[%s260 + $0xa4] sm:$0xf]
      %v339 = vld [vmem:[%s260 + $0xa8] sm:$0xf]
      %v340 = vld [vmem:[%s260 + $0xac] sm:$0xf]
      %v341 = vld [vmem:[%s260 + $0xb0] sm:$0xf]
      %v342 = vld [vmem:[%s260 + $0xb4] sm:$0xf]
      %v343 = vld [vmem:[%s260 + $0xb8] sm:$0xf]
      %v344 = vld [vmem:[%s260 + $0xbc] sm:$0xf]
      %v345 = vld [vmem:[%s256 + $0x60] sm:$0xff]
      %v346 = vld [vmem:[%s256 + $0x68] sm:$0xf]
      %s347 = scalar_lea.vmem %s260, 192
      %v348 = vld [vmem:[%s347] sm:$0xf]
      %v349 = vld [vmem:[%s347 + $0x4] sm:$0xf]
      %v350 = vld [vmem:[%s347 + $0x8] sm:$0xf]
      %v351 = vld [vmem:[%s347 + $0xc] sm:$0xf]
      %v352 = vld [vmem:[%s347 + $0x10] sm:$0xf]
      %v353 = vld [vmem:[%s347 + $0x14] sm:$0xf]
      %v354 = vld [vmem:[%s347 + $0x18] sm:$0xf]
      %v355 = vld [vmem:[%s347 + $0x1c] sm:$0xf]
      %v356 = vld [vmem:[%s347 + $0x20] sm:$0xf]
      %v357 = vld [vmem:[%s347 + $0x24] sm:$0xf]
      %v358 = vld [vmem:[%s347 + $0x28] sm:$0xf]
      %v359 = vld [vmem:[%s347 + $0x2c] sm:$0xf]
      %v360 = vld [vmem:[%s347 + $0x30] sm:$0xf]
      %v361 = vld [vmem:[%s347 + $0x34] sm:$0xf]
      %v362 = vld [vmem:[%s347 + $0x38] sm:$0xf]
      %v363 = vld [vmem:[%s347 + $0x3c] sm:$0xf]
      %v364 = vld [vmem:[%s347 + $0x40] sm:$0xf]
      %v365 = vld [vmem:[%s347 + $0x44] sm:$0xf]
      %v366 = vld [vmem:[%s347 + $0x48] sm:$0xf]
      %v367 = vld [vmem:[%s347 + $0x4c] sm:$0xf]
      %v368 = vld [vmem:[%s347 + $0x50] sm:$0xf]
      %v369 = vld [vmem:[%s347 + $0x54] sm:$0xf]
      %v370 = vld [vmem:[%s347 + $0x58] sm:$0xf]
      %v371 = vld [vmem:[%s347 + $0x5c] sm:$0xf]
      %v372 = vld [vmem:[%s347 + $0x60] sm:$0xf]
      %v373 = vld [vmem:[%s347 + $0x64] sm:$0xf]
      %v374 = vld [vmem:[%s347 + $0x68] sm:$0xf]
      %v375 = vld [vmem:[%s347 + $0x6c] sm:$0xf]
      %v376 = vld [vmem:[%s347 + $0x70] sm:$0xf]
      %v377 = vld [vmem:[%s347 + $0x74] sm:$0xf]
      %v378 = vld [vmem:[%s347 + $0x78] sm:$0xf]
      %v379 = vld [vmem:[%s347 + $0x7c] sm:$0xf]
      %v380 = vld [vmem:[%s347 + $0x80] sm:$0xf]
      %v381 = vld [vmem:[%s347 + $0x84] sm:$0xf]
      %v382 = vld [vmem:[%s347 + $0x88] sm:$0xf]
      %v383 = vld [vmem:[%s347 + $0x8c] sm:$0xf]
      %v384 = vld [vmem:[%s347 + $0x90] sm:$0xf]
      %v385 = vld [vmem:[%s347 + $0x94] sm:$0xf]
      %v386 = vld [vmem:[%s347 + $0x98] sm:$0xf]
      %v387 = vld [vmem:[%s347 + $0x9c] sm:$0xf]
      %v388 = vld [vmem:[%s347 + $0xa0] sm:$0xf]
      %v389 = vld [vmem:[%s347 + $0xa4] sm:$0xf]
      %v390 = vld [vmem:[%s347 + $0xa8] sm:$0xf]
      %v391 = vld [vmem:[%s347 + $0xac] sm:$0xf]
      %v392 = vld [vmem:[%s347 + $0xb0] sm:$0xf]
      %v393 = vld [vmem:[%s347 + $0xb4] sm:$0xf]
      %v394 = vld [vmem:[%s347 + $0xb8] sm:$0xf]
      %v395 = vld [vmem:[%s347 + $0xbc] sm:$0xf]
      %v412 = vunpack.c.l.b16 %v283
      %v413 = vunpack.c.h.b16 %v283
      %v414 = vunpack.c.l.b16 %v284
      %v415 = vunpack.c.l.b16 %v285
      %v416 = vunpack.c.h.b16 %v285
      %v417 = vunpack.c.l.b16 %v286
      %v418 = vunpack.c.l.b16 %v287
      %v419 = vunpack.c.h.b16 %v287
      %v420 = vunpack.c.l.b16 %v288
      %v421 = vunpack.c.l.b16 %v289
      %v422 = vunpack.c.h.b16 %v289
      %v423 = vunpack.c.l.b16 %v290
      %v424 = vunpack.c.l.b16 %v291
      %v425 = vunpack.c.h.b16 %v291
      %v426 = vunpack.c.l.b16 %v292
      %v427 = vunpack.c.l.b16 %v293
      %v428 = vunpack.c.h.b16 %v293
      %v429 = vunpack.c.l.b16 %v294
      %v430 = vunpack.c.l.b16 %v295
      %v431 = vunpack.c.h.b16 %v295
      %v432 = vunpack.c.l.b16 %v296
      %v433 = vunpack.c.l.b16 %v345
      %v434 = vunpack.c.h.b16 %v345
      %v435 = vunpack.c.l.b16 %v346
      %v436 = vpack.c.b16 %v415, %v412
      %v437 = vpack.c.b16 %v416, %v413
      %v438 = vpack.c.b16 %v417, %v414
      %v439 = vpack.c.b16 %v421, %v418
      %v440 = vpack.c.b16 %v422, %v419
      %v441 = vpack.c.b16 %v423, %v420
      %v442 = vpack.c.b16 %v427, %v424
      %v443 = vpack.c.b16 %v428, %v425
      %v444 = vpack.c.b16 %v429, %v426
      %v445 = vpack.c.b16 %v433, %v430
      %v446 = vpack.c.b16 %v434, %v431
      %v447 = vpack.c.b16 %v435, %v432
      %v508 = vunpack.c.l.b16 %v348
      %v509 = vunpack.c.l.b16 %v349
      %v510 = vunpack.c.l.b16 %v350
      %v511 = vunpack.c.l.b16 %v351
      %v512 = vunpack.c.l.b16 %v352
      %v513 = vunpack.c.l.b16 %v353
      %v514 = vunpack.c.l.b16 %v354
      %v515 = vunpack.c.l.b16 %v355
      %v516 = vunpack.c.l.b16 %v356
      %v517 = vunpack.c.l.b16 %v357
      %v518 = vunpack.c.l.b16 %v358
      %v519 = vunpack.c.l.b16 %v359
      %v520 = vunpack.c.l.b16 %v360
      %v521 = vunpack.c.l.b16 %v361
      %v522 = vunpack.c.l.b16 %v362
      %v523 = vunpack.c.l.b16 %v363
      %v524 = vunpack.c.l.b16 %v364
      %v525 = vunpack.c.l.b16 %v365
      %v526 = vunpack.c.l.b16 %v366
      %v527 = vunpack.c.l.b16 %v367
      %v528 = vunpack.c.l.b16 %v368
      %v529 = vunpack.c.l.b16 %v369
      %v530 = vunpack.c.l.b16 %v370
      %v531 = vunpack.c.l.b16 %v371
      %v532 = vunpack.c.l.b16 %v372
      %v533 = vunpack.c.l.b16 %v373
      %v534 = vunpack.c.l.b16 %v374
      %v535 = vunpack.c.l.b16 %v375
      %v536 = vunpack.c.l.b16 %v376
      %v537 = vunpack.c.l.b16 %v377
      %v538 = vunpack.c.l.b16 %v378
      %v539 = vunpack.c.l.b16 %v379
      %v540 = vunpack.c.l.b16 %v380
      %v541 = vunpack.c.l.b16 %v381
      %v542 = vunpack.c.l.b16 %v382
      %v543 = vunpack.c.l.b16 %v383
      %v544 = vunpack.c.l.b16 %v384
      %v545 = vunpack.c.l.b16 %v385
      %v546 = vunpack.c.l.b16 %v386
      %v547 = vunpack.c.l.b16 %v387
      %v548 = vunpack.c.l.b16 %v388
      %v549 = vunpack.c.l.b16 %v389
      %v550 = vunpack.c.l.b16 %v390
      %v551 = vunpack.c.l.b16 %v391
      %v552 = vunpack.c.l.b16 %v392
      %v553 = vunpack.c.l.b16 %v393
      %v554 = vunpack.c.l.b16 %v394
      %v555 = vunpack.c.l.b16 %v395
      %v556 = vpack.c.b16 %v509, %v508
      %v557 = vpack.c.b16 %v511, %v510
      %v558 = vpack.c.b16 %v513, %v512
      %v559 = vpack.c.b16 %v515, %v514
      %v560 = vpack.c.b16 %v517, %v516
      %v561 = vpack.c.b16 %v519, %v518
      %v562 = vpack.c.b16 %v521, %v520
      %v563 = vpack.c.b16 %v523, %v522
      %v564 = vpack.c.b16 %v525, %v524
      %v565 = vpack.c.b16 %v527, %v526
      %v566 = vpack.c.b16 %v529, %v528
      %v567 = vpack.c.b16 %v531, %v530
      %v568 = vpack.c.b16 %v533, %v532
      %v569 = vpack.c.b16 %v535, %v534
      %v570 = vpack.c.b16 %v537, %v536
      %v571 = vpack.c.b16 %v539, %v538
      %v572 = vpack.c.b16 %v541, %v540
      %v573 = vpack.c.b16 %v543, %v542
      %v574 = vpack.c.b16 %v545, %v544
      %v575 = vpack.c.b16 %v547, %v546
      %v576 = vpack.c.b16 %v549, %v548
      %v577 = vpack.c.b16 %v551, %v550
      %v578 = vpack.c.b16 %v553, %v552
      %v579 = vpack.c.b16 %v555, %v554
      %604 = vmatprep.subr.bf16.mxu0 0
      %605 = vmatpush1.bf16.msra.mxu0 %v556
      %606 = vmatprep.subr.bf16.mxu0 0
      %607 = vmatpush1.bf16.msra.mxu0 %v557
      %608 = vmatprep.subr.bf16.mxu0 0
      %609 = vmatpush1.bf16.msra.mxu0 %v558
      %610 = vmatprep.subr.bf16.mxu0 0
      %611 = vmatpush1.bf16.msra.mxu0 %v559
      %612 = vmatprep.subr.bf16.mxu0 0
      %613 = vmatpush1.bf16.msra.mxu0 %v560
      %614 = vmatprep.subr.bf16.mxu0 0
      %615 = vmatpush1.bf16.msra.mxu0 %v561
      %616 = vmatprep.subr.bf16.mxu0 0
      %617 = vmatpush1.bf16.msra.mxu0 %v562
      %618 = vmatprep.subr.bf16.mxu0 0
      %619 = vmatpush1.bf16.msra.mxu0 %v563
      %620 = vmatprep.subr.bf16.mxu0 0
      %621 = vmatpush1.bf16.msra.mxu0 %v564
      %622 = vmatprep.subr.bf16.mxu0 0
      %623 = vmatpush1.bf16.msra.mxu0 %v565
      %624 = vmatprep.subr.bf16.mxu0 0
      %625 = vmatpush1.bf16.msra.mxu0 %v566
      %626 = vmatprep.subr.bf16.mxu0 0
      %627 = vmatpush1.bf16.msra.mxu0 %v567
      %628 = vmatprep.subr.bf16.mxu0 0
      %629 = vmatpush1.bf16.msra.mxu0 %v568
      %630 = vmatprep.subr.bf16.mxu0 0
      %631 = vmatpush1.bf16.msra.mxu0 %v569
      %632 = vmatprep.subr.bf16.mxu0 0
      %633 = vmatpush1.bf16.msra.mxu0 %v570
      %634 = vmatprep.subr.bf16.mxu0 0
      %635 = vmatpush1.bf16.msra.mxu0 %v571
      %636 = vmatprep.mubr.bf16.mxu0 %v437
      %637 = vmatmul.mubr.bf16.gmra.mrb[0].mxu0 %v436
      %v638 = vpop.f32.mrb[0].mxu0
      %v639 = vadd.f32 0.0, %v638
      %v640 = vpop.f32.mrb[0].mxu0
      %v641 = vpop.f32.mrb[0].mxu0
      %v642 = vadd.f32 0.0, %v641
      %v643 = vpop.f32.mrb[0].mxu0
      %644 = vmatprep.mubr.bf16.mxu0 %v440
      %645 = vmatmul.mubr.bf16.gmra.mrb[0].mxu0 %v439
      %v646 = vpop.f32.mrb[0].mxu0
      %v647 = vadd.f32 0.0, %v646
      %v648 = vpop.f32.mrb[0].mxu0
      %v649 = vpop.f32.mrb[0].mxu0
      %v650 = vadd.f32 0.0, %v649
      %v651 = vpop.f32.mrb[0].mxu0
      %652 = vmatprep.mubr.bf16.mxu0 %v443
      %653 = vmatmul.mubr.bf16.gmra.mrb[0].mxu0 %v442
      %v654 = vpop.f32.mrb[0].mxu0
      %v655 = vadd.f32 0.0, %v654
      %v656 = vpop.f32.mrb[0].mxu0
      %v657 = vpop.f32.mrb[0].mxu0
      %v658 = vadd.f32 0.0, %v657
      %v659 = vpop.f32.mrb[0].mxu0
      %660 = vmatprep.mubr.bf16.mxu0 %v446
      %661 = vmatmul.mubr.bf16.gmra.mrb[0].mxu0 %v445
      %v662 = vpop.f32.mrb[0].mxu0
      %v663 = vadd.f32 0.0, %v662
      %v664 = vpop.f32.mrb[0].mxu0
      %v665 = vpop.f32.mrb[0].mxu0
      %v666 = vadd.f32 0.0, %v665
      %v667 = vpop.f32.mrb[0].mxu0
      %668 = vdwg.mxu0
      %669 = vmatprep.subr.bf16.mxu0 0
      %670 = vmatpush1.bf16.msra.mxu0 %v572
      %671 = vmatprep.subr.bf16.mxu0 0
      %672 = vmatpush1.bf16.msra.mxu0 %v573
      %673 = vmatprep.subr.bf16.mxu0 0
      %674 = vmatpush1.bf16.msra.mxu0 %v574
      %675 = vmatprep.subr.bf16.mxu0 0
      %676 = vmatpush1.bf16.msra.mxu0 %v575
      %677 = vmatprep.subr.bf16.mxu0 0
      %678 = vmatpush1.bf16.msra.mxu0 %v576
      %679 = vmatprep.subr.bf16.mxu0 0
      %680 = vmatpush1.bf16.msra.mxu0 %v577
      %681 = vmatprep.subr.bf16.mxu0 0
      %682 = vmatpush1.bf16.msra.mxu0 %v578
      %683 = vmatprep.subr.bf16.mxu0 0
      %684 = vmatpush1.bf16.msra.mxu0 %v579
      %685 = vmatprep.subr.bf16.mxu0 0
      %686 = vmatpush1.bf16.msra.mxu0 0
      %687 = vmatprep.subr.bf16.mxu0 0
      %688 = vmatpush1.bf16.msra.mxu0 0
      %689 = vmatprep.subr.bf16.mxu0 0
      %690 = vmatpush1.bf16.msra.mxu0 0
      %691 = vmatprep.subr.bf16.mxu0 0
      %692 = vmatpush1.bf16.msra.mxu0 0
      %693 = vmatprep.subr.bf16.mxu0 0
      %694 = vmatpush1.bf16.msra.mxu0 0
      %695 = vmatprep.subr.bf16.mxu0 0
      %696 = vmatpush1.bf16.msra.mxu0 0
      %697 = vmatprep.subr.bf16.mxu0 0
      %698 = vmatpush1.bf16.msra.mxu0 0
      %699 = vmatprep.subr.bf16.mxu0 0
      %700 = vmatpush1.bf16.msra.mxu0 0
      %701 = vmatprep.mubr.bf16.mxu0 0
      %702 = vmatmul.mubr.bf16.gmra.mrb[0].mxu0 %v438
      %v703 = vpop.f32.mrb[0].mxu0
      %v704 = vadd.f32 %v639, %v703
      %v705 = vpop.f32.mrb[0].mxu0
      %v706 = vpop.f32.mrb[0].mxu0
      %v707 = vadd.f32 %v642, %v706
      %v708 = vpop.f32.mrb[0].mxu0
      %709 = vmatprep.mubr.bf16.mxu0 0
      %710 = vmatmul.mubr.bf16.gmra.mrb[0].mxu0 %v441
      %v711 = vpop.f32.mrb[0].mxu0
      %v712 = vadd.f32 %v647, %v711
      %v713 = vpop.f32.mrb[0].mxu0
      %v714 = vpop.f32.mrb[0].mxu0
      %v715 = vadd.f32 %v650, %v714
      %v716 = vpop.f32.mrb[0].mxu0
      %717 = vmatprep.mubr.bf16.mxu0 0
      %718 = vmatmul.mubr.bf16.gmra.mrb[0].mxu0 %v444
      %v719 = vpop.f32.mrb[0].mxu0
      %v720 = vadd.f32 %v655, %v719
      %v721 = vpop.f32.mrb[0].mxu0
      %v722 = vpop.f32.mrb[0].mxu0
      %v723 = vadd.f32 %v658, %v722
      %v724 = vpop.f32.mrb[0].mxu0
      %725 = vmatprep.mubr.bf16.mxu0 0
      %726 = vmatmul.mubr.bf16.gmra.mrb[0].mxu0 %v447
      %v727 = vpop.f32.mrb[0].mxu0
      %v728 = vadd.f32 %v663, %v727
      %v729 = vpop.f32.mrb[0].mxu0
      %v730 = vpop.f32.mrb[0].mxu0
      %v731 = vadd.f32 %v666, %v730
      %v732 = vpop.f32.mrb[0].mxu0
      %733 = vdwg.mxu0
      %v736 = vunpack.c.l.b16 %v281
      %v737 = vunpack.c.h.b16 %v281
      %v738 = vunpack.c.l.b16 %v282
      %v739 = vpack.c.b16 %v412, %v736
      %v740 = vpack.c.b16 %v413, %v737
      %v741 = vpack.c.b16 %v414, %v738
      %v742 = vpack.c.b16 %v418, %v415
      %v743 = vpack.c.b16 %v419, %v416
      %v744 = vpack.c.b16 %v420, %v417
      %v745 = vpack.c.b16 %v424, %v421
      %v746 = vpack.c.b16 %v425, %v422
      %v747 = vpack.c.b16 %v426, %v423
      %v748 = vpack.c.b16 %v430, %v427
      %v749 = vpack.c.b16 %v431, %v428
      %v750 = vpack.c.b16 %v432, %v429
      %v811 = vunpack.c.l.b16 %v297
      %v812 = vunpack.c.l.b16 %v298
      %v813 = vunpack.c.l.b16 %v299
      %v814 = vunpack.c.l.b16 %v300
      %v815 = vunpack.c.l.b16 %v301
      %v816 = vunpack.c.l.b16 %v302
      %v817 = vunpack.c.l.b16 %v303
      %v818 = vunpack.c.l.b16 %v304
      %v819 = vunpack.c.l.b16 %v305
      %v820 = vunpack.c.l.b16 %v306
      %v821 = vunpack.c.l.b16 %v307
      %v822 = vunpack.c.l.b16 %v308
      %v823 = vunpack.c.l.b16 %v309
      %v824 = vunpack.c.l.b16 %v310
      %v825 = vunpack.c.l.b16 %v311
      %v826 = vunpack.c.l.b16 %v312
      %v827 = vunpack.c.l.b16 %v313
      %v828 = vunpack.c.l.b16 %v314
      %v829 = vunpack.c.l.b16 %v315
      %v830 = vunpack.c.l.b16 %v316
      %v831 = vunpack.c.l.b16 %v317
      %v832 = vunpack.c.l.b16 %v318
      %v833 = vunpack.c.l.b16 %v319
      %v834 = vunpack.c.l.b16 %v320
      %v835 = vunpack.c.l.b16 %v321
      %v836 = vunpack.c.l.b16 %v322
      %v837 = vunpack.c.l.b16 %v323
      %v838 = vunpack.c.l.b16 %v324
      %v839 = vunpack.c.l.b16 %v325
      %v840 = vunpack.c.l.b16 %v326
      %v841 = vunpack.c.l.b16 %v327
      %v842 = vunpack.c.l.b16 %v328
      %v843 = vunpack.c.l.b16 %v329
      %v844 = vunpack.c.l.b16 %v330
      %v845 = vunpack.c.l.b16 %v331
      %v846 = vunpack.c.l.b16 %v332
      %v847 = vunpack.c.l.b16 %v333
      %v848 = vunpack.c.l.b16 %v334
      %v849 = vunpack.c.l.b16 %v335
      %v850 = vunpack.c.l.b16 %v336
      %v851 = vunpack.c.l.b16 %v337
      %v852 = vunpack.c.l.b16 %v338
      %v853 = vunpack.c.l.b16 %v339
      %v854 = vunpack.c.l.b16 %v340
      %v855 = vunpack.c.l.b16 %v341
      %v856 = vunpack.c.l.b16 %v342
      %v857 = vunpack.c.l.b16 %v343
      %v858 = vunpack.c.l.b16 %v344
      %v859 = vpack.c.b16 %v812, %v811
      %v860 = vpack.c.b16 %v814, %v813
      %v861 = vpack.c.b16 %v816, %v815
      %v862 = vpack.c.b16 %v818, %v817
      %v863 = vpack.c.b16 %v820, %v819
      %v864 = vpack.c.b16 %v822, %v821
      %v865 = vpack.c.b16 %v824, %v823
      %v866 = vpack.c.b16 %v826, %v825
      %v867 = vpack.c.b16 %v828, %v827
      %v868 = vpack.c.b16 %v830, %v829
      %v869 = vpack.c.b16 %v832, %v831
      %v870 = vpack.c.b16 %v834, %v833
      %v871 = vpack.c.b16 %v836, %v835
      %v872 = vpack.c.b16 %v838, %v837
      %v873 = vpack.c.b16 %v840, %v839
      %v874 = vpack.c.b16 %v842, %v841
      %v875 = vpack.c.b16 %v844, %v843
      %v876 = vpack.c.b16 %v846, %v845
      %v877 = vpack.c.b16 %v848, %v847
      %v878 = vpack.c.b16 %v850, %v849
      %v879 = vpack.c.b16 %v852, %v851
      %v880 = vpack.c.b16 %v854, %v853
      %v881 = vpack.c.b16 %v856, %v855
      %v882 = vpack.c.b16 %v858, %v857
      %907 = vmatprep.subr.bf16.mxu0 0
      %908 = vmatpush1.bf16.msra.mxu0 %v859
      %909 = vmatprep.subr.bf16.mxu0 0
      %910 = vmatpush1.bf16.msra.mxu0 %v860
      %911 = vmatprep.subr.bf16.mxu0 0
      %912 = vmatpush1.bf16.msra.mxu0 %v861
      %913 = vmatprep.subr.bf16.mxu0 0
      %914 = vmatpush1.bf16.msra.mxu0 %v862
      %915 = vmatprep.subr.bf16.mxu0 0
      %916 = vmatpush1.bf16.msra.mxu0 %v863
      %917 = vmatprep.subr.bf16.mxu0 0
      %918 = vmatpush1.bf16.msra.mxu0 %v864
      %919 = vmatprep.subr.bf16.mxu0 0
      %920 = vmatpush1.bf16.msra.mxu0 %v865
      %921 = vmatprep.subr.bf16.mxu0 0
      %922 = vmatpush1.bf16.msra.mxu0 %v866
      %923 = vmatprep.subr.bf16.mxu0 0
      %924 = vmatpush1.bf16.msra.mxu0 %v867
      %925 = vmatprep.subr.bf16.mxu0 0
      %926 = vmatpush1.bf16.msra.mxu0 %v868
      %927 = vmatprep.subr.bf16.mxu0 0
      %928 = vmatpush1.bf16.msra.mxu0 %v869
      %929 = vmatprep.subr.bf16.mxu0 0
      %930 = vmatpush1.bf16.msra.mxu0 %v870
      %931 = vmatprep.subr.bf16.mxu0 0
      %932 = vmatpush1.bf16.msra.mxu0 %v871
      %933 = vmatprep.subr.bf16.mxu0 0
      %934 = vmatpush1.bf16.msra.mxu0 %v872
      %935 = vmatprep.subr.bf16.mxu0 0
      %936 = vmatpush1.bf16.msra.mxu0 %v873
      %937 = vmatprep.subr.bf16.mxu0 0
      %938 = vmatpush1.bf16.msra.mxu0 %v874
      %939 = vmatprep.mubr.bf16.mxu0 %v740
      %940 = vmatmul.mubr.bf16.gmra.mrb[0].mxu0 %v739
      %v941 = vpop.f32.mrb[0].mxu0
      %v942 = vadd.f32 %v704, %v941
      %v943 = vpop.f32.mrb[0].mxu0
      %v944 = vpop.f32.mrb[0].mxu0
      %v945 = vadd.f32 %v707, %v944
      %v946 = vpop.f32.mrb[0].mxu0
      %947 = vmatprep.mubr.bf16.mxu0 %v743
      %948 = vmatmul.mubr.bf16.gmra.mrb[0].mxu0 %v742
      %v949 = vpop.f32.mrb[0].mxu0
      %v950 = vadd.f32 %v712, %v949
      %v951 = vpop.f32.mrb[0].mxu0
      %v952 = vpop.f32.mrb[0].mxu0
      %v953 = vadd.f32 %v715, %v952
      %v954 = vpop.f32.mrb[0].mxu0
      %955 = vmatprep.mubr.bf16.mxu0 %v746
      %956 = vmatmul.mubr.bf16.gmra.mrb[0].mxu0 %v745
      %v957 = vpop.f32.mrb[0].mxu0
      %v958 = vadd.f32 %v720, %v957
      %v959 = vpop.f32.mrb[0].mxu0
      %v960 = vpop.f32.mrb[0].mxu0
      %v961 = vadd.f32 %v723, %v960
      %v962 = vpop.f32.mrb[0].mxu0
      %963 = vmatprep.mubr.bf16.mxu0 %v749
      %964 = vmatmul.mubr.bf16.gmra.mrb[0].mxu0 %v748
      %v965 = vpop.f32.mrb[0].mxu0
      %v966 = vadd.f32 %v728, %v965
      %v967 = vpop.f32.mrb[0].mxu0
      %v968 = vpop.f32.mrb[0].mxu0
      %v969 = vadd.f32 %v731, %v968
      %v970 = vpop.f32.mrb[0].mxu0
      %971 = vdwg.mxu0
      %972 = vmatprep.subr.bf16.mxu0 0
      %973 = vmatpush1.bf16.msra.mxu0 %v875
      %974 = vmatprep.subr.bf16.mxu0 0
      %975 = vmatpush1.bf16.msra.mxu0 %v876
      %976 = vmatprep.subr.bf16.mxu0 0
      %977 = vmatpush1.bf16.msra.mxu0 %v877
      %978 = vmatprep.subr.bf16.mxu0 0
      %979 = vmatpush1.bf16.msra.mxu0 %v878
      %980 = vmatprep.subr.bf16.mxu0 0
      %981 = vmatpush1.bf16.msra.mxu0 %v879
      %982 = vmatprep.subr.bf16.mxu0 0
      %983 = vmatpush1.bf16.msra.mxu0 %v880
      %984 = vmatprep.subr.bf16.mxu0 0
      %985 = vmatpush1.bf16.msra.mxu0 %v881
      %986 = vmatprep.subr.bf16.mxu0 0
      %987 = vmatpush1.bf16.msra.mxu0 %v882
      %988 = vmatprep.subr.bf16.mxu0 0
      %989 = vmatpush1.bf16.msra.mxu0 0
      %990 = vmatprep.subr.bf16.mxu0 0
      %991 = vmatpush1.bf16.msra.mxu0 0
      %992 = vmatprep.subr.bf16.mxu0 0
      %993 = vmatpush1.bf16.msra.mxu0 0
      %994 = vmatprep.subr.bf16.mxu0 0
      %995 = vmatpush1.bf16.msra.mxu0 0
      %996 = vmatprep.subr.bf16.mxu0 0
      %997 = vmatpush1.bf16.msra.mxu0 0
      %998 = vmatprep.subr.bf16.mxu0 0
      %999 = vmatpush1.bf16.msra.mxu0 0
      %1000 = vmatprep.subr.bf16.mxu0 0
      %1001 = vmatpush1.bf16.msra.mxu0 0
      %1002 = vmatprep.subr.bf16.mxu0 0
      %1003 = vmatpush1.bf16.msra.mxu0 0
      %1004 = vmatprep.mubr.bf16.mxu0 0
      %1005 = vmatmul.mubr.bf16.gmra.mrb[0].mxu0 %v741
      %v1006 = vpop.f32.mrb[0].mxu0
      %v1007 = vadd.f32 %v942, %v1006
      %v1008 = vpop.f32.mrb[0].mxu0
      %v1009 = vpop.f32.mrb[0].mxu0
      %v1010 = vadd.f32 %v945, %v1009
      %v1011 = vpop.f32.mrb[0].mxu0
      %1012 = vmatprep.mubr.bf16.mxu0 0
      %1013 = vmatmul.mubr.bf16.gmra.mrb[0].mxu0 %v744
      %v1014 = vpop.f32.mrb[0].mxu0
      %v1015 = vadd.f32 %v950, %v1014
      %v1016 = vpop.f32.mrb[0].mxu0
      %v1017 = vpop.f32.mrb[0].mxu0
      %v1018 = vadd.f32 %v953, %v1017
      %v1019 = vpop.f32.mrb[0].mxu0
      %1020 = vmatprep.mubr.bf16.mxu0 0
      %1021 = vmatmul.mubr.bf16.gmra.mrb[0].mxu0 %v747
      %v1022 = vpop.f32.mrb[0].mxu0
      %v1023 = vadd.f32 %v958, %v1022
      %v1024 = vpop.f32.mrb[0].mxu0
      %v1025 = vpop.f32.mrb[0].mxu0
      %v1026 = vadd.f32 %v961, %v1025
      %v1027 = vpop.f32.mrb[0].mxu0
      %1028 = vmatprep.mubr.bf16.mxu0 0
      %1029 = vmatmul.mubr.bf16.gmra.mrb[0].mxu0 %v750
      %v1030 = vpop.f32.mrb[0].mxu0
      %v1031 = vadd.f32 %v966, %v1030
      %v1032 = vpop.f32.mrb[0].mxu0
      %v1033 = vpop.f32.mrb[0].mxu0
      %v1034 = vadd.f32 %v969, %v1033
      %v1035 = vpop.f32.mrb[0].mxu0
      %1036 = vdwg.mxu0
      %v1037 = vld [vmem:[%s256 + $0x18] sm:$0xff]
      %v1038 = vld [vmem:[%s256 + $0x20] sm:$0xf]
      %v1039 = vld [vmem:[%s256 + $0x24] sm:$0xff]
      %v1040 = vld [vmem:[%s256 + $0x2c] sm:$0xf]
      %v1041 = vld [vmem:[%s256 + $0x30] sm:$0xff]
      %v1042 = vld [vmem:[%s256 + $0x38] sm:$0xf]
      %v1043 = vld [vmem:[%s256 + $0x3c] sm:$0xff]
      %v1044 = vld [vmem:[%s256 + $0x44] sm:$0xf]
      %v1045 = vld [vmem:[%s256 + $0x48] sm:$0xff]
      %v1046 = vld [vmem:[%s256 + $0x50] sm:$0xf]
      %v1047 = vld [vmem:[%s256 + $0x54] sm:$0xff]
      %v1048 = vld [vmem:[%s256 + $0x5c] sm:$0xf]
      %v1049 = vld [vmem:[%s256 + $0x60] sm:$0xff]
      %v1050 = vld [vmem:[%s256 + $0x68] sm:$0xf]
      %v1051 = vld [vmem:[%s256 + $0x6c] sm:$0xff]
      %v1052 = vld [vmem:[%s256 + $0x74] sm:$0xf]
      %s1053 = scalar_lea.vmem %s260, 384
      %v1054 = vld [vmem:[%s1053] sm:$0xf]
      %v1055 = vld [vmem:[%s1053 + $0x4] sm:$0xf]
      %v1056 = vld [vmem:[%s1053 + $0x8] sm:$0xf]
      %v1057 = vld [vmem:[%s1053 + $0xc] sm:$0xf]
      %v1058 = vld [vmem:[%s1053 + $0x10] sm:$0xf]
      %v1059 = vld [vmem:[%s1053 + $0x14] sm:$0xf]
      %v1060 = vld [vmem:[%s1053 + $0x18] sm:$0xf]
      %v1061 = vld [vmem:[%s1053 + $0x1c] sm:$0xf]
      %v1062 = vld [vmem:[%s1053 + $0x20] sm:$0xf]
      %v1063 = vld [vmem:[%s1053 + $0x24] sm:$0xf]
      %v1064 = vld [vmem:[%s1053 + $0x28] sm:$0xf]
      %v1065 = vld [vmem:[%s1053 + $0x2c] sm:$0xf]
      %v1066 = vld [vmem:[%s1053 + $0x30] sm:$0xf]
      %v1067 = vld [vmem:[%s1053 + $0x34] sm:$0xf]
      %v1068 = vld [vmem:[%s1053 + $0x38] sm:$0xf]
      %v1069 = vld [vmem:[%s1053 + $0x3c] sm:$0xf]
      %v1070 = vld [vmem:[%s1053 + $0x40] sm:$0xf]
      %v1071 = vld [vmem:[%s1053 + $0x44] sm:$0xf]
      %v1072 = vld [vmem:[%s1053 + $0x48] sm:$0xf]
      %v1073 = vld [vmem:[%s1053 + $0x4c] sm:$0xf]
      %v1074 = vld [vmem:[%s1053 + $0x50] sm:$0xf]
      %v1075 = vld [vmem:[%s1053 + $0x54] sm:$0xf]
      %v1076 = vld [vmem:[%s1053 + $0x58] sm:$0xf]
      %v1077 = vld [vmem:[%s1053 + $0x5c] sm:$0xf]
      %v1078 = vld [vmem:[%s1053 + $0x60] sm:$0xf]
      %v1079 = vld [vmem:[%s1053 + $0x64] sm:$0xf]
      %v1080 = vld [vmem:[%s1053 + $0x68] sm:$0xf]
      %v1081 = vld [vmem:[%s1053 + $0x6c] sm:$0xf]
      %v1082 = vld [vmem:[%s1053 + $0x70] sm:$0xf]
      %v1083 = vld [vmem:[%s1053 + $0x74] sm:$0xf]
      %v1084 = vld [vmem:[%s1053 + $0x78] sm:$0xf]
      %v1085 = vld [vmem:[%s1053 + $0x7c] sm:$0xf]
      %v1086 = vld [vmem:[%s1053 + $0x80] sm:$0xf]
      %v1087 = vld [vmem:[%s1053 + $0x84] sm:$0xf]
      %v1088 = vld [vmem:[%s1053 + $0x88] sm:$0xf]
      %v1089 = vld [vmem:[%s1053 + $0x8c] sm:$0xf]
      %v1090 = vld [vmem:[%s1053 + $0x90] sm:$0xf]
      %v1091 = vld [vmem:[%s1053 + $0x94] sm:$0xf]
      %v1092 = vld [vmem:[%s1053 + $0x98] sm:$0xf]
      %v1093 = vld [vmem:[%s1053 + $0x9c] sm:$0xf]
      %v1094 = vld [vmem:[%s1053 + $0xa0] sm:$0xf]
      %v1095 = vld [vmem:[%s1053 + $0xa4] sm:$0xf]
      %v1096 = vld [vmem:[%s1053 + $0xa8] sm:$0xf]
      %v1097 = vld [vmem:[%s1053 + $0xac] sm:$0xf]
      %v1098 = vld [vmem:[%s1053 + $0xb0] sm:$0xf]
      %v1099 = vld [vmem:[%s1053 + $0xb4] sm:$0xf]
      %v1100 = vld [vmem:[%s1053 + $0xb8] sm:$0xf]
      %v1101 = vld [vmem:[%s1053 + $0xbc] sm:$0xf]
      %v1118 = vunpack.c.l.b16 %v1037
      %v1119 = vunpack.c.h.b16 %v1037
      %v1120 = vunpack.c.l.b16 %v1038
      %v1121 = vunpack.c.l.b16 %v1039
      %v1122 = vunpack.c.h.b16 %v1039
      %v1123 = vunpack.c.l.b16 %v1040
      %v1124 = vunpack.c.l.b16 %v1041
      %v1125 = vunpack.c.h.b16 %v1041
      %v1126 = vunpack.c.l.b16 %v1042
      %v1127 = vunpack.c.l.b16 %v1043
      %v1128 = vunpack.c.h.b16 %v1043
      %v1129 = vunpack.c.l.b16 %v1044
      %v1130 = vunpack.c.l.b16 %v1045
      %v1131 = vunpack.c.h.b16 %v1045
      %v1132 = vunpack.c.l.b16 %v1046
      %v1133 = vunpack.c.l.b16 %v1047
      %v1134 = vunpack.c.h.b16 %v1047
      %v1135 = vunpack.c.l.b16 %v1048
      %v1136 = vunpack.c.l.b16 %v1049
      %v1137 = vunpack.c.h.b16 %v1049
      %v1138 = vunpack.c.l.b16 %v1050
      %v1139 = vunpack.c.l.b16 %v1051
      %v1140 = vunpack.c.h.b16 %v1051
      %v1141 = vunpack.c.l.b16 %v1052
      %v1142 = vpack.c.b16 %v1121, %v1118
      %v1143 = vpack.c.b16 %v1122, %v1119
      %v1144 = vpack.c.b16 %v1123, %v1120
      %v1145 = vpack.c.b16 %v1127, %v1124
      %v1146 = vpack.c.b16 %v1128, %v1125
      %v1147 = vpack.c.b16 %v1129, %v1126
      %v1148 = vpack.c.b16 %v1133, %v1130
      %v1149 = vpack.c.b16 %v1134, %v1131
      %v1150 = vpack.c.b16 %v1135, %v1132
      %v1151 = vpack.c.b16 %v1139, %v1136
      %v1152 = vpack.c.b16 %v1140, %v1137
      %v1153 = vpack.c.b16 %v1141, %v1138
      %v1214 = vunpack.c.l.b16 %v1054
      %v1215 = vunpack.c.l.b16 %v1055
      %v1216 = vunpack.c.l.b16 %v1056
      %v1217 = vunpack.c.l.b16 %v1057
      %v1218 = vunpack.c.l.b16 %v1058
      %v1219 = vunpack.c.l.b16 %v1059
      %v1220 = vunpack.c.l.b16 %v1060
      %v1221 = vunpack.c.l.b16 %v1061
      %v1222 = vunpack.c.l.b16 %v1062
      %v1223 = vunpack.c.l.b16 %v1063
      %v1224 = vunpack.c.l.b16 %v1064
      %v1225 = vunpack.c.l.b16 %v1065
      %v1226 = vunpack.c.l.b16 %v1066
      %v1227 = vunpack.c.l.b16 %v1067
      %v1228 = vunpack.c.l.b16 %v1068
      %v1229 = vunpack.c.l.b16 %v1069
      %v1230 = vunpack.c.l.b16 %v1070
      %v1231 = vunpack.c.l.b16 %v1071
      %v1232 = vunpack.c.l.b16 %v1072
      %v1233 = vunpack.c.l.b16 %v1073
      %v1234 = vunpack.c.l.b16 %v1074
      %v1235 = vunpack.c.l.b16 %v1075
      %v1236 = vunpack.c.l.b16 %v1076
      %v1237 = vunpack.c.l.b16 %v1077
      %v1238 = vunpack.c.l.b16 %v1078
      %v1239 = vunpack.c.l.b16 %v1079
      %v1240 = vunpack.c.l.b16 %v1080
      %v1241 = vunpack.c.l.b16 %v1081
      %v1242 = vunpack.c.l.b16 %v1082
      %v1243 = vunpack.c.l.b16 %v1083
      %v1244 = vunpack.c.l.b16 %v1084
      %v1245 = vunpack.c.l.b16 %v1085
      %v1246 = vunpack.c.l.b16 %v1086
      %v1247 = vunpack.c.l.b16 %v1087
      %v1248 = vunpack.c.l.b16 %v1088
      %v1249 = vunpack.c.l.b16 %v1089
      %v1250 = vunpack.c.l.b16 %v1090
      %v1251 = vunpack.c.l.b16 %v1091
      %v1252 = vunpack.c.l.b16 %v1092
      %v1253 = vunpack.c.l.b16 %v1093
      %v1254 = vunpack.c.l.b16 %v1094
      %v1255 = vunpack.c.l.b16 %v1095
      %v1256 = vunpack.c.l.b16 %v1096
      %v1257 = vunpack.c.l.b16 %v1097
      %v1258 = vunpack.c.l.b16 %v1098
      %v1259 = vunpack.c.l.b16 %v1099
      %v1260 = vunpack.c.l.b16 %v1100
      %v1261 = vunpack.c.l.b16 %v1101
      %v1262 = vpack.c.b16 %v1215, %v1214
      %v1263 = vpack.c.b16 %v1217, %v1216
      %v1264 = vpack.c.b16 %v1219, %v1218
      %v1265 = vpack.c.b16 %v1221, %v1220
      %v1266 = vpack.c.b16 %v1223, %v1222
      %v1267 = vpack.c.b16 %v1225, %v1224
      %v1268 = vpack.c.b16 %v1227, %v1226
      %v1269 = vpack.c.b16 %v1229, %v1228
      %v1270 = vpack.c.b16 %v1231, %v1230
      %v1271 = vpack.c.b16 %v1233, %v1232
      %v1272 = vpack.c.b16 %v1235, %v1234
      %v1273 = vpack.c.b16 %v1237, %v1236
      %v1274 = vpack.c.b16 %v1239, %v1238
      %v1275 = vpack.c.b16 %v1241, %v1240
      %v1276 = vpack.c.b16 %v1243, %v1242
      %v1277 = vpack.c.b16 %v1245, %v1244
      %v1278 = vpack.c.b16 %v1247, %v1246
      %v1279 = vpack.c.b16 %v1249, %v1248
      %v1280 = vpack.c.b16 %v1251, %v1250
      %v1281 = vpack.c.b16 %v1253, %v1252
      %v1282 = vpack.c.b16 %v1255, %v1254
      %v1283 = vpack.c.b16 %v1257, %v1256
      %v1284 = vpack.c.b16 %v1259, %v1258
      %v1285 = vpack.c.b16 %v1261, %v1260
      %1310 = vmatprep.subr.bf16.mxu0 0
      %1311 = vmatpush1.bf16.msra.mxu0 %v1262
      %1312 = vmatprep.subr.bf16.mxu0 0
      %1313 = vmatpush1.bf16.msra.mxu0 %v1263
      %1314 = vmatprep.subr.bf16.mxu0 0
      %1315 = vmatpush1.bf16.msra.mxu0 %v1264
      %1316 = vmatprep.subr.bf16.mxu0 0
      %1317 = vmatpush1.bf16.msra.mxu0 %v1265
      %1318 = vmatprep.subr.bf16.mxu0 0
      %1319 = vmatpush1.bf16.msra.mxu0 %v1266
      %1320 = vmatprep.subr.bf16.mxu0 0
      %1321 = vmatpush1.bf16.msra.mxu0 %v1267
      %1322 = vmatprep.subr.bf16.mxu0 0
      %1323 = vmatpush1.bf16.msra.mxu0 %v1268
      %1324 = vmatprep.subr.bf16.mxu0 0
      %1325 = vmatpush1.bf16.msra.mxu0 %v1269
      %1326 = vmatprep.subr.bf16.mxu0 0
      %1327 = vmatpush1.bf16.msra.mxu0 %v1270
      %1328 = vmatprep.subr.bf16.mxu0 0
      %1329 = vmatpush1.bf16.msra.mxu0 %v1271
      %1330 = vmatprep.subr.bf16.mxu0 0
      %1331 = vmatpush1.bf16.msra.mxu0 %v1272
      %1332 = vmatprep.subr.bf16.mxu0 0
      %1333 = vmatpush1.bf16.msra.mxu0 %v1273
      %1334 = vmatprep.subr.bf16.mxu0 0
      %1335 = vmatpush1.bf16.msra.mxu0 %v1274
      %1336 = vmatprep.subr.bf16.mxu0 0
      %1337 = vmatpush1.bf16.msra.mxu0 %v1275
      %1338 = vmatprep.subr.bf16.mxu0 0
      %1339 = vmatpush1.bf16.msra.mxu0 %v1276
      %1340 = vmatprep.subr.bf16.mxu0 0
      %1341 = vmatpush1.bf16.msra.mxu0 %v1277
      %1342 = vmatprep.mubr.bf16.mxu0 %v1143
      %1343 = vmatmul.mubr.bf16.gmra.mrb[0].mxu0 %v1142
      %v1344 = vpop.f32.mrb[0].mxu0
      %v1345 = vadd.f32 0.0, %v1344
      %v1346 = vpop.f32.mrb[0].mxu0
      %v1347 = vpop.f32.mrb[0].mxu0
      %v1348 = vadd.f32 0.0, %v1347
      %v1349 = vpop.f32.mrb[0].mxu0
      %1350 = vmatprep.mubr.bf16.mxu0 %v1146
      %1351 = vmatmul.mubr.bf16.gmra.mrb[0].mxu0 %v1145
      %v1352 = vpop.f32.mrb[0].mxu0
      %v1353 = vadd.f32 0.0, %v1352
      %v1354 = vpop.f32.mrb[0].mxu0
      %v1355 = vpop.f32.mrb[0].mxu0
      %v1356 = vadd.f32 0.0, %v1355
      %v1357 = vpop.f32.mrb[0].mxu0
      %1358 = vmatprep.mubr.bf16.mxu0 %v1149
      %1359 = vmatmul.mubr.bf16.gmra.mrb[0].mxu0 %v1148
      %v1360 = vpop.f32.mrb[0].mxu0
      %v1361 = vadd.f32 0.0, %v1360
      %v1362 = vpop.f32.mrb[0].mxu0
      %v1363 = vpop.f32.mrb[0].mxu0
      %v1364 = vadd.f32 0.0, %v1363
      %v1365 = vpop.f32.mrb[0].mxu0
      %1366 = vmatprep.mubr.bf16.mxu0 %v1152
      %1367 = vmatmul.mubr.bf16.gmra.mrb[0].mxu0 %v1151
      %v1368 = vpop.f32.mrb[0].mxu0
      %v1369 = vadd.f32 0.0, %v1368
      %v1370 = vpop.f32.mrb[0].mxu0
      %v1371 = vpop.f32.mrb[0].mxu0
      %v1372 = vadd.f32 0.0, %v1371
      %v1373 = vpop.f32.mrb[0].mxu0
      %1374 = vdwg.mxu0
      %1375 = vmatprep.subr.bf16.mxu0 0
      %1376 = vmatpush1.bf16.msra.mxu0 %v1278
      %1377 = vmatprep.subr.bf16.mxu0 0
      %1378 = vmatpush1.bf16.msra.mxu0 %v1279
      %1379 = vmatprep.subr.bf16.mxu0 0
      %1380 = vmatpush1.bf16.msra.mxu0 %v1280
      %1381 = vmatprep.subr.bf16.mxu0 0
      %1382 = vmatpush1.bf16.msra.mxu0 %v1281
      %1383 = vmatprep.subr.bf16.mxu0 0
      %1384 = vmatpush1.bf16.msra.mxu0 %v1282
      %1385 = vmatprep.subr.bf16.mxu0 0
      %1386 = vmatpush1.bf16.msra.mxu0 %v1283
      %1387 = vmatprep.subr.bf16.mxu0 0
      %1388 = vmatpush1.bf16.msra.mxu0 %v1284
      %1389 = vmatprep.subr.bf16.mxu0 0
      %1390 = vmatpush1.bf16.msra.mxu0 %v1285
      %1391 = vmatprep.subr.bf16.mxu0 0
      %1392 = vmatpush1.bf16.msra.mxu0 0
      %1393 = vmatprep.subr.bf16.mxu0 0
      %1394 = vmatpush1.bf16.msra.mxu0 0
      %1395 = vmatprep.subr.bf16.mxu0 0
      %1396 = vmatpush1.bf16.msra.mxu0 0
      %1397 = vmatprep.subr.bf16.mxu0 0
      %1398 = vmatpush1.bf16.msra.mxu0 0
      %1399 = vmatprep.subr.bf16.mxu0 0
      %1400 = vmatpush1.bf16.msra.mxu0 0
      %1401 = vmatprep.subr.bf16.mxu0 0
      %1402 = vmatpush1.bf16.msra.mxu0 0
      %1403 = vmatprep.subr.bf16.mxu0 0
      %1404 = vmatpush1.bf16.msra.mxu0 0
      %1405 = vmatprep.subr.bf16.mxu0 0
      %1406 = vmatpush1.bf16.msra.mxu0 0
      %1407 = vmatprep.mubr.bf16.mxu0 0
      %1408 = vmatmul.mubr.bf16.gmra.mrb[0].mxu0 %v1144
      %v1409 = vpop.f32.mrb[0].mxu0
      %v1410 = vadd.f32 %v1345, %v1409
      %v1411 = vpop.f32.mrb[0].mxu0
      %v1412 = vpop.f32.mrb[0].mxu0
      %v1413 = vadd.f32 %v1348, %v1412
      %v1414 = vpop.f32.mrb[0].mxu0
      %1415 = vmatprep.mubr.bf16.mxu0 0
      %1416 = vmatmul.mubr.bf16.gmra.mrb[0].mxu0 %v1147
      %v1417 = vpop.f32.mrb[0].mxu0
      %v1418 = vadd.f32 %v1353, %v1417
      %v1419 = vpop.f32.mrb[0].mxu0
      %v1420 = vpop.f32.mrb[0].mxu0
      %v1421 = vadd.f32 %v1356, %v1420
      %v1422 = vpop.f32.mrb[0].mxu0
      %1423 = vmatprep.mubr.bf16.mxu0 0
      %1424 = vmatmul.mubr.bf16.gmra.mrb[0].mxu0 %v1150
      %v1425 = vpop.f32.mrb[0].mxu0
      %v1426 = vadd.f32 %v1361, %v1425
      %v1427 = vpop.f32.mrb[0].mxu0
      %v1428 = vpop.f32.mrb[0].mxu0
      %v1429 = vadd.f32 %v1364, %v1428
      %v1430 = vpop.f32.mrb[0].mxu0
      %1431 = vmatprep.mubr.bf16.mxu0 0
      %1432 = vmatmul.mubr.bf16.gmra.mrb[0].mxu0 %v1153
      %v1433 = vpop.f32.mrb[0].mxu0
      %v1434 = vadd.f32 %v1369, %v1433
      %v1435 = vpop.f32.mrb[0].mxu0
      %v1436 = vpop.f32.mrb[0].mxu0
      %v1437 = vadd.f32 %v1372, %v1436
      %v1438 = vpop.f32.mrb[0].mxu0
      %1439 = vdwg.mxu0
      %v1440 = vadd.f32 %v1007, %v1410
      %v1441 = vadd.f32 %v1010, %v1413
      %v1442 = vadd.f32 %v1015, %v1418
      %v1443 = vadd.f32 %v1018, %v1421
      %v1444 = vadd.f32 %v1023, %v1426
      %v1445 = vadd.f32 %v1026, %v1429
      %v1446 = vadd.f32 %v1031, %v1434
      %v1447 = vadd.f32 %v1034, %v1437
      %v1448 = vld [vmem:[%s263] sm:$0x1]
      %v1450 = vlaneseq
      %v1451 = vshrl.u32 %v1450, 7
      %v1452 = vsub.s32 0, %v1451
      %v1453 = vrot.slane %v1448, %v1452
      %v1455 = vadd.f32 %v1440, %v1453
      %v1456 = vadd.f32 %v1441, %v1453
      %v1457 = vadd.f32 %v1442, %v1453
      %v1458 = vadd.f32 %v1443, %v1453
      %v1459 = vadd.f32 %v1444, %v1453
      %v1460 = vadd.f32 %v1445, %v1453
      %v1461 = vadd.f32 %v1446, %v1453
      %v1462 = vadd.f32 %v1447, %v1453
      %vm1463 = vcmp.ge.f32.partialorder %v1455, 0.0
      %vm1464 = vcmp.ge.f32.partialorder %v1456, 0.0
      %vm1465 = vcmp.ge.f32.partialorder %v1457, 0.0
      %vm1466 = vcmp.ge.f32.partialorder %v1458, 0.0
      %vm1467 = vcmp.ge.f32.partialorder %v1459, 0.0
      %vm1468 = vcmp.ge.f32.partialorder %v1460, 0.0
      %vm1469 = vcmp.ge.f32.partialorder %v1461, 0.0
      %vm1470 = vcmp.ge.f32.partialorder %v1462, 0.0
      %v1471 = vmul.f32 %v1455, 0.1
      %v1472 = vmul.f32 %v1456, 0.1
      %v1473 = vmul.f32 %v1457, 0.1
      %v1474 = vmul.f32 %v1458, 0.1
      %v1475 = vmul.f32 %v1459, 0.1
      %v1476 = vmul.f32 %v1460, 0.1
      %v1477 = vmul.f32 %v1461, 0.1
      %v1478 = vmul.f32 %v1462, 0.1
      %v1479 = vsel %vm1463, %v1455, %v1471
      %v1480 = vsel %vm1464, %v1456, %v1472
      %v1481 = vsel %vm1465, %v1457, %v1473
      %v1482 = vsel %vm1466, %v1458, %v1474
      %v1483 = vsel %vm1467, %v1459, %v1475
      %v1484 = vsel %vm1468, %v1460, %v1476
      %v1485 = vsel %vm1469, %v1461, %v1477
      %v1486 = vsel %vm1470, %v1462, %v1478
      %v1487 = vld [vmem:[%s271] sm:$0xf]
      %v1488 = vld [vmem:[%s271 + $0x4] sm:$0xf]
      %v1489 = vld [vmem:[%s271 + $0x8] sm:$0xf]
      %v1490 = vld [vmem:[%s271 + $0xc] sm:$0xf]
      %v1491 = vld [vmem:[%s271 + $0x10] sm:$0xf]
      %v1492 = vld [vmem:[%s271 + $0x14] sm:$0xf]
      %v1493 = vld [vmem:[%s271 + $0x18] sm:$0xf]
      %v1494 = vld [vmem:[%s271 + $0x1c] sm:$0xf]
      %v1495 = vunpack.c.l.bf16 %v1487
      %v1496 = vunpack.c.l.bf16 %v1488
      %v1497 = vunpack.c.l.bf16 %v1489
      %v1498 = vunpack.c.l.bf16 %v1490
      %v1499 = vunpack.c.l.bf16 %v1491
      %v1500 = vunpack.c.l.bf16 %v1492
      %v1501 = vunpack.c.l.bf16 %v1493
      %v1502 = vunpack.c.l.bf16 %v1494
      %v1503 = vadd.f32 %v1495, %v1479
      %v1504 = vadd.f32 %v1496, %v1480
      %v1505 = vadd.f32 %v1497, %v1481
      %v1506 = vadd.f32 %v1498, %v1482
      %v1507 = vadd.f32 %v1499, %v1483
      %v1508 = vadd.f32 %v1500, %v1484
      %v1509 = vadd.f32 %v1501, %v1485
      %v1510 = vadd.f32 %v1502, %v1486
      %v1511 = vpack.c.bf16 %v1504, %v1503
      %v1512 = vpack.c.bf16 %v1506, %v1505
      %v1513 = vpack.c.bf16 %v1508, %v1507
      %v1514 = vpack.c.bf16 %v1510, %v1509
      %v1519 = vunpack.c.l.b16 %v1511
      %v1520 = vunpack.c.h.b16 %v1511
      %v1521 = vunpack.c.l.b16 %v1512
      %v1522 = vunpack.c.h.b16 %v1512
      %v1523 = vunpack.c.l.b16 %v1513
      %v1524 = vunpack.c.h.b16 %v1513
      %v1525 = vunpack.c.l.b16 %v1514
      %v1526 = vunpack.c.h.b16 %v1514
      %v1527 = vpack.c.b16 %v1519, %v1519
      %v1528 = vpack.c.b16 %v1520, %v1520
      %v1529 = vpack.c.b16 %v1521, %v1521
      %v1530 = vpack.c.b16 %v1522, %v1522
      %v1531 = vpack.c.b16 %v1523, %v1523
      %v1532 = vpack.c.b16 %v1524, %v1524
      %v1533 = vpack.c.b16 %v1525, %v1525
      %v1534 = vpack.c.b16 %v1526, %v1526
      %1543 = vst [vmem:[%s279] sm:$0xf] %v1527
      %1544 = vst [vmem:[%s279 + $0x4] sm:$0xf] %v1528
      %1545 = vst [vmem:[%s279 + $0x8] sm:$0xf] %v1529
      %1546 = vst [vmem:[%s279 + $0xc] sm:$0xf] %v1530
      %1547 = vst [vmem:[%s279 + $0x10] sm:$0xf] %v1531
      %1548 = vst [vmem:[%s279 + $0x14] sm:$0xf] %v1532
      %1549 = vst [vmem:[%s279 + $0x18] sm:$0xf] %v1533
      %1550 = vst [vmem:[%s279 + $0x1c] sm:$0xf] %v1534
      %p1551 = scmp.lt.s32.totalorder %s19, 1
      %s1552 = scalar_select %p1551, %s19, 1
      %p1553 = scmp.lt.s32.totalorder %s20, 0
      %s1554 = scalar_select %p1553, %s20, 0
      %s1555 = smul.addr %s1552, 8
      %s1556 = sadd.s32 %s1554, %s1555
      %s1557 = smul.addr %s1556, 4
      %s1558 = scalar_lea.vmem %s4, %s1557
      // Predicated region
      $region37: #{csp_darknet_block_forward.12} parent=35 // pred_check
        %p1559 = pneg %p153
      $region38: #{csp_darknet_block_forward.12} parent=35 // pred_check_branch
        %1561 = sbr.rel (%p1559) target = $region40
      $region39: #{csp_darknet_block_forward.12} parent=35 // pred_region
        _
      $region40: #{csp_darknet_block_forward.12} parent=35 // pred_fallthru
        _
    $region36: #{csp_darknet_block_forward.12} parent=5 // pred_fallthru
      _
    %p1562 = scmp.le.s32.totalorder 2, %s10
    // Predicated region
    $region41: #{csp_darknet_block_forward.12} parent=5 // pred_check
      %p1563 = pneg %p1562
    $region42: #{csp_darknet_block_forward.12} parent=5 // pred_check_branch
      %1565 = sbr.rel (%p1563) target = $region44
    $region43: #{csp_darknet_block_forward.12} parent=5 // pred_region
      %s1566 = ssub.s32 %s10, 2
      // Predicated region
      $region45: #{csp_darknet_block_forward.12} parent=43 // pred_check
        %p1567 = pneg %p159
      $region46: #{csp_darknet_block_forward.12} parent=43 // pred_check_branch
        %1569 = sbr.rel (%p1567) target = $region48
      $region47: #{csp_darknet_block_forward.12} parent=43 // pred_region
        %p1570 = scmp.lt.s32.totalorder %s21, 1
        %s1571 = scalar_select %p1570, %s21, 1
        %p1572 = scmp.lt.s32.totalorder %s22, 0
        %s1573 = scalar_select %p1572, %s22, 0
        %s1574 = smul.addr %s1571, 8
        %s1575 = sadd.s32 %s1573, %s1574
        %s1576 = smul.addr %s1575, 4
        %s1577 = scalar_lea.vmem %s4, %s1576
      $region48: #{csp_darknet_block_forward.12} parent=43 // pred_fallthru
        _
    $region44: #{csp_darknet_block_forward.12} parent=5 // pred_fallthru
      _
  $region6: #{csp_darknet_block_forward.12} parent=0 // loop_footer
    %s14 = sadd.s32 1, %s10
  $region7: #{csp_darknet_block_forward.12} parent=0 // loop_footer_branch
    %9 = sbr.rel target = $region3
  $region8: #{csp_darknet_block_forward.12} parent=0 // loop_exit
    _

</llo_original>
